<compile_context>
chip_gen: v7x
topology: tpu7x:2x2x1
jax: 0.10.0
libtpu: 0.0.40
codegen_flags: <defaults>
</compile_context>

<pallas_src>
import functools

import jax
import jax.numpy as jnp
from jax import lax
from jax.experimental import pallas as pl
from jax.experimental.pallas import tpu as pltpu
import numpy as np


_TOKENS_PER_STEP = 8  # one full 8-sublane output tile per grid step

# Hash constants: stream-separation multipliers + lowbias32 finalizer.
_C_SEED = 0x9E3779B1
_C_ROW = 0x85EBCA77
_C_COL = 0xC2B2AE3D
_C_MIX1 = 0x7FEB352D
_C_MIX2 = 0x846CA68B


def _keep_mask(seed_u32, row_id_u32, shape, threshold):
    """Deterministic per-(seed, row, column) Bernoulli(1 - p) keep mask.

    Counter-based uint32 hash -> top 24 bits compared against the integer threshold
    round(p * 2^24).  Pure VPU integer ops (no float conversion, no stateful PRNG).
    """
    col = lax.broadcasted_iota(jnp.int32, shape, len(shape) - 1).astype(jnp.uint32)
    x = (seed_u32 * jnp.uint32(_C_SEED)) ^ (row_id_u32 * jnp.uint32(_C_ROW)) ^ (
        col * jnp.uint32(_C_COL))
    x = x ^ (x >> jnp.uint32(16))
    x = x * jnp.uint32(_C_MIX1)
    x = x ^ (x >> jnp.uint32(15))
    x = x * jnp.uint32(_C_MIX2)
    x = x ^ (x >> jnp.uint32(16))
    bits24 = (x >> jnp.uint32(8)).astype(jnp.int32)  # uniform in [0, 2^24)
    return bits24 >= jnp.int32(threshold)            # keep with prob (1 - p)


def _embedding_dropout_kernel(ids_ref, seed_ref, *refs, tokens_per_step, apply_dropout,
                              threshold, scale):
    """ids_ref:  SMEM (T_pad,) int32 -- scalar-prefetch: flattened (padded, clamped) token ids
       seed_ref: SMEM (1,)     int32 -- scalar-prefetch: dropout seed
       refs[:tokens_per_step]: VMEM (1, 1, D) -- gathered weight rows (one per token in the tile)
       refs[tokens_per_step]:  VMEM (1, tokens_per_step, D) -- output tile
    """
    w_refs = refs[:tokens_per_step]
    out_ref = refs[tokens_per_step]

    t0 = pl.program_id(0) * tokens_per_step
    seed_u = seed_ref[0].astype(jnp.uint32)

    parts = []
    for k in range(tokens_per_step):
        row = w_refs[k][...]                                    # (1, 1, D)
        if apply_dropout:                                       # statically removed in eval
            rid = ids_ref[t0 + k].astype(jnp.uint32)
            keep = _keep_mask(seed_u, rid, row.shape, threshold)
            row = jnp.where(keep, row * jnp.float32(scale),
                            jnp.float32(0.0)).astype(row.dtype)
        parts.append(row)

    # Single dense (tokens_per_step, D) store instead of 8 masked single-sublane stores.
    out_ref[...] = jnp.concatenate(parts, axis=1)


def _row_index_map(k, tokens_per_step):
    def index_map(i, ids_ref, seed_ref):
        # Block row size is 1, so the block index along rows IS the gathered row id.
        return (ids_ref[i * tokens_per_step + k], 0, 0)
    return index_map


@functools.partial(jax.jit, static_argnames=("dropoute", "training"))
def embedding_dropout(ids, weight, seed, dropoute=0.5, training=True):
    """ids: [B, S] int32, weight: [V, D] float32 -> [B, S, D] float32."""
    B, S = ids.shape
    V, D = weight.shape
    T = B * S
    tps = _TOKENS_PER_STEP
    T_pad = ((T + tps - 1) // tps) * tps

    # Clamp ids (no runtime OOB check on TPU) and pad to a whole number of tiles.
    ids_flat = jnp.clip(ids.reshape(T).astype(jnp.int32), 0, V - 1)
    ids_flat = jnp.pad(ids_flat, (0, T_pad - T))
    seed_arr = jnp.reshape(jnp.asarray(seed, jnp.int32), (1,))

    # (V, 1, D) view so gathered blocks (1, 1, D) keep their last two dims == full array dims.
    w3 = weight.reshape(V, 1, D)

    p = float(dropoute) if training else 0.0
    apply_dropout = p > 0.0
    threshold = min(max(int(round(p * (1 << 24))), 0), 1 << 24)   # p == 1 -> drop everything
    scale = (1.0 / (1.0 - p)) if p < 1.0 else 0.0

    kernel = functools.partial(
        _embedding_dropout_kernel,
        tokens_per_step=tps,
        apply_dropout=apply_dropout,
        threshold=threshold,
        scale=scale,
    )

    out = pl.pallas_call(
        kernel,
        out_shape=jax.ShapeDtypeStruct((T_pad // tps, tps, D), weight.dtype),
        grid_spec=pltpu.PrefetchScalarGridSpec(
            num_scalar_prefetch=2,                     # ids, seed
            grid=(T_pad // tps,),
            in_specs=[pl.BlockSpec((1, 1, D), _row_index_map(k, tps)) for k in range(tps)],
            out_specs=pl.BlockSpec((1, tps, D), lambda i, ids, seed: (i, 0, 0)),
        ),
        compiler_params=pltpu.CompilerParams(dimension_semantics=("parallel",)),
    )(ids_flat, seed_arr, *([w3] * tps))

    return out.reshape(T_pad, D)[:T].reshape(B, S, D)


if __name__ == "__main__":
    # Small shapes consistent with an embedding forward pass.
    B, S = 2, 8          # batch, sequence length
    V, D = 64, 128       # vocab size, embedding dim
    dropoute = 0.5

    key = jax.random.PRNGKey(0)
    k_ids, k_w = jax.random.split(key)
    ids = jax.random.randint(k_ids, (B, S), 0, V, dtype=jnp.int32)
    ids = ids.at[1, 0].set(ids[0, 0])        # force a duplicate token id
    weight = jax.random.normal(k_w, (V, D), dtype=jnp.float32)

    # Training mode: dropout with p=0.5 applied to (gathered rows of) the weight table.
    out_train = embedding_dropout(ids, weight, seed=1234, dropoute=dropoute, training=True)
    out_train = jax.block_until_ready(out_train)

    # Eval mode: plain embedding lookup; check against JAX reference.
    out_eval = embedding_dropout(ids, weight, seed=1234, dropoute=dropoute, training=False)
    out_eval = jax.block_until_ready(out_eval)

    ref_eval = jnp.take(weight, ids.reshape(-1), axis=0).reshape(B, S, D)
    assert np.allclose(np.asarray(out_eval), np.asarray(ref_eval), atol=1e-6), "eval gather mismatch"

    # Training-mode structural checks: every element is either 0 (dropped) or weight/(1-p) (kept).
    gathered = np.asarray(ref_eval)
    got = np.asarray(out_train)
    scaled = gathered / (1.0 - dropoute)
    ok = np.isclose(got, 0.0, atol=1e-6) | np.isclose(got, scaled, atol=1e-5)
    assert ok.all(), "training-mode dropout output has unexpected values"

    # Drop fraction should be close to p.
    drop_frac = float(np.mean(got == 0.0))
    assert 0.35 < drop_frac < 0.65, f"drop fraction {drop_frac} far from p={dropoute}"

    # Duplicate token ids must see the identical dropped row (mask is per weight-table row).
    assert np.array_equal(got[0, 0], got[1, 0]), "duplicate ids got different dropout masks"

    assert out_train.shape == (B, S, D) and out_train.dtype == jnp.float32

    print("KERNEL_OK")
</pallas_src>

<mosaic_0001>
module attributes {stable_mosaic.version = 11 : i64} {
  func.func @_embedding_dropout_kernel(%arg0: i32, %arg1: memref<16xi32, #tpu.memory_space<smem>>, %arg2: memref<1xi32, #tpu.memory_space<smem>>, %arg3: memref<1x1x128xf32, #tpu.memory_space<vmem>>, %arg4: memref<1x1x128xf32, #tpu.memory_space<vmem>>, %arg5: memref<1x1x128xf32, #tpu.memory_space<vmem>>, %arg6: memref<1x1x128xf32, #tpu.memory_space<vmem>>, %arg7: memref<1x1x128xf32, #tpu.memory_space<vmem>>, %arg8: memref<1x1x128xf32, #tpu.memory_space<vmem>>, %arg9: memref<1x1x128xf32, #tpu.memory_space<vmem>>, %arg10: memref<1x1x128xf32, #tpu.memory_space<vmem>>, %arg11: memref<1x8x128xf32, #tpu.memory_space<vmem>>) attributes {dimension_semantics = [#tpu.dimension_semantics<parallel>], iteration_bounds = array<i64: 2>, scalar_prefetch = 2 : i64, scratch_operands = 0 : i64, tpu.core_type = #tpu.core_type<tc>, window_params = [{transform_indices = @transform_0, window_bounds = array<i64: 1, 1, 128>}, {transform_indices = @transform_1, window_bounds = array<i64: 1, 1, 128>}, {transform_indices = @transform_2, window_bounds = array<i64: 1, 1, 128>}, {transform_indices = @transform_3, window_bounds = array<i64: 1, 1, 128>}, {transform_indices = @transform_4, window_bounds = array<i64: 1, 1, 128>}, {transform_indices = @transform_5, window_bounds = array<i64: 1, 1, 128>}, {transform_indices = @transform_6, window_bounds = array<i64: 1, 1, 128>}, {transform_indices = @transform_7, window_bounds = array<i64: 1, 1, 128>}, {transform_indices = @transform_8, window_bounds = array<i64: 1, 8, 128>}]} {
    %c8_i32 = arith.constant 8 : i32
    %0 = arith.muli %arg0, %c8_i32 : i32
    %c0 = arith.constant 0 : index
    %1 = memref.load %arg2[%c0] : memref<1xi32, #tpu.memory_space<smem>>
    %c0_0 = arith.constant 0 : index
    %c0_1 = arith.constant 0 : index
    %c0_2 = arith.constant 0 : index
    %2 = vector.load %arg3[%c0_0, %c0_1, %c0_2] : memref<1x1x128xf32, #tpu.memory_space<vmem>>, vector<1x1x128xf32>
    %c0_i32 = arith.constant 0 : i32
    %3 = arith.addi %0, %c0_i32 : i32
    %4 = arith.index_cast %3 : i32 to index
    %5 = memref.load %arg1[%4] : memref<16xi32, #tpu.memory_space<smem>>
    %6 = tpu.iota {dimensions = array<i32: 2>} : vector<1x1x128xi32>
    %c-1640531535_i32 = arith.constant -1640531535 : i32
    %7 = arith.muli %1, %c-1640531535_i32 : i32
    %c-2048144777_i32 = arith.constant -2048144777 : i32
    %8 = arith.muli %5, %c-2048144777_i32 : i32
    %9 = arith.xori %7, %8 : i32
    %c-1028477379_i32 = arith.constant -1028477379 : i32
    %10 = vector.broadcast %c-1028477379_i32 : i32 to vector<1x1x128xi32>
    %11 = arith.muli %6, %10 : vector<1x1x128xi32>
    %12 = vector.broadcast %9 : i32 to vector<1x1x128xi32>
    %13 = arith.xori %12, %11 : vector<1x1x128xi32>
    %c16_i32 = arith.constant 16 : i32
    %14 = vector.broadcast %c16_i32 : i32 to vector<1x1x128xi32>
    %15 = arith.shrui %13, %14 : vector<1x1x128xi32>
    %16 = arith.xori %13, %15 : vector<1x1x128xi32>
    %c2146121005_i32 = arith.constant 2146121005 : i32
    %17 = vector.broadcast %c2146121005_i32 : i32 to vector<1x1x128xi32>
    %18 = arith.muli %16, %17 : vector<1x1x128xi32>
    %c15_i32 = arith.constant 15 : i32
    %19 = vector.broadcast %c15_i32 : i32 to vector<1x1x128xi32>
    %20 = arith.shrui %18, %19 : vector<1x1x128xi32>
    %21 = arith.xori %18, %20 : vector<1x1x128xi32>
    %c-2073254261_i32 = arith.constant -2073254261 : i32
    %22 = vector.broadcast %c-2073254261_i32 : i32 to vector<1x1x128xi32>
    %23 = arith.muli %21, %22 : vector<1x1x128xi32>
    %c16_i32_3 = arith.constant 16 : i32
    %24 = vector.broadcast %c16_i32_3 : i32 to vector<1x1x128xi32>
    %25 = arith.shrui %23, %24 : vector<1x1x128xi32>
    %26 = arith.xori %23, %25 : vector<1x1x128xi32>
    %c8_i32_4 = arith.constant 8 : i32
    %27 = vector.broadcast %c8_i32_4 : i32 to vector<1x1x128xi32>
    %28 = arith.shrui %26, %27 : vector<1x1x128xi32>
    %c8388608_i32 = arith.constant 8388608 : i32
    %29 = vector.broadcast %c8388608_i32 : i32 to vector<1x1x128xi32>
    %30 = arith.cmpi sge, %28, %29 : vector<1x1x128xi32>
    %cst = arith.constant 2.000000e+00 : f32
    %31 = vector.broadcast %cst : f32 to vector<1x1x128xf32>
    %32 = arith.mulf %2, %31 : vector<1x1x128xf32>
    %cst_5 = arith.constant 0.000000e+00 : f32
    %33 = vector.broadcast %cst_5 : f32 to vector<1x1x128xf32>
    %34 = arith.select %30, %32, %33 : vector<1x1x128xi1>, vector<1x1x128xf32>
    %c0_6 = arith.constant 0 : index
    %c0_7 = arith.constant 0 : index
    %c0_8 = arith.constant 0 : index
    %35 = vector.load %arg4[%c0_6, %c0_7, %c0_8] : memref<1x1x128xf32, #tpu.memory_space<vmem>>, vector<1x1x128xf32>
    %c1_i32 = arith.constant 1 : i32
    %36 = arith.addi %0, %c1_i32 : i32
    %37 = arith.index_cast %36 : i32 to index
    %38 = memref.load %arg1[%37] : memref<16xi32, #tpu.memory_space<smem>>
    %39 = tpu.iota {dimensions = array<i32: 2>} : vector<1x1x128xi32>
    %c-1640531535_i32_9 = arith.constant -1640531535 : i32
    %40 = arith.muli %1, %c-1640531535_i32_9 : i32
    %c-2048144777_i32_10 = arith.constant -2048144777 : i32
    %41 = arith.muli %38, %c-2048144777_i32_10 : i32
    %42 = arith.xori %40, %41 : i32
    %c-1028477379_i32_11 = arith.constant -1028477379 : i32
    %43 = vector.broadcast %c-1028477379_i32_11 : i32 to vector<1x1x128xi32>
    %44 = arith.muli %39, %43 : vector<1x1x128xi32>
    %45 = vector.broadcast %42 : i32 to vector<1x1x128xi32>
    %46 = arith.xori %45, %44 : vector<1x1x128xi32>
    %c16_i32_12 = arith.constant 16 : i32
    %47 = vector.broadcast %c16_i32_12 : i32 to vector<1x1x128xi32>
    %48 = arith.shrui %46, %47 : vector<1x1x128xi32>
    %49 = arith.xori %46, %48 : vector<1x1x128xi32>
    %c2146121005_i32_13 = arith.constant 2146121005 : i32
    %50 = vector.broadcast %c2146121005_i32_13 : i32 to vector<1x1x128xi32>
    %51 = arith.muli %49, %50 : vector<1x1x128xi32>
    %c15_i32_14 = arith.constant 15 : i32
    %52 = vector.broadcast %c15_i32_14 : i32 to vector<1x1x128xi32>
    %53 = arith.shrui %51, %52 : vector<1x1x128xi32>
    %54 = arith.xori %51, %53 : vector<1x1x128xi32>
    %c-2073254261_i32_15 = arith.constant -2073254261 : i32
    %55 = vector.broadcast %c-2073254261_i32_15 : i32 to vector<1x1x128xi32>
    %56 = arith.muli %54, %55 : vector<1x1x128xi32>
    %c16_i32_16 = arith.constant 16 : i32
    %57 = vector.broadcast %c16_i32_16 : i32 to vector<1x1x128xi32>
    %58 = arith.shrui %56, %57 : vector<1x1x128xi32>
    %59 = arith.xori %56, %58 : vector<1x1x128xi32>
    %c8_i32_17 = arith.constant 8 : i32
    %60 = vector.broadcast %c8_i32_17 : i32 to vector<1x1x128xi32>
    %61 = arith.shrui %59, %60 : vector<1x1x128xi32>
    %c8388608_i32_18 = arith.constant 8388608 : i32
    %62 = vector.broadcast %c8388608_i32_18 : i32 to vector<1x1x128xi32>
    %63 = arith.cmpi sge, %61, %62 : vector<1x1x128xi32>
    %cst_19 = arith.constant 2.000000e+00 : f32
    %64 = vector.broadcast %cst_19 : f32 to vector<1x1x128xf32>
    %65 = arith.mulf %35, %64 : vector<1x1x128xf32>
    %cst_20 = arith.constant 0.000000e+00 : f32
    %66 = vector.broadcast %cst_20 : f32 to vector<1x1x128xf32>
    %67 = arith.select %63, %65, %66 : vector<1x1x128xi1>, vector<1x1x128xf32>
    %c0_21 = arith.constant 0 : index
    %c0_22 = arith.constant 0 : index
    %c0_23 = arith.constant 0 : index
    %68 = vector.load %arg5[%c0_21, %c0_22, %c0_23] : memref<1x1x128xf32, #tpu.memory_space<vmem>>, vector<1x1x128xf32>
    %c2_i32 = arith.constant 2 : i32
    %69 = arith.addi %0, %c2_i32 : i32
    %70 = arith.index_cast %69 : i32 to index
    %71 = memref.load %arg1[%70] : memref<16xi32, #tpu.memory_space<smem>>
    %72 = tpu.iota {dimensions = array<i32: 2>} : vector<1x1x128xi32>
    %c-1640531535_i32_24 = arith.constant -1640531535 : i32
    %73 = arith.muli %1, %c-1640531535_i32_24 : i32
    %c-2048144777_i32_25 = arith.constant -2048144777 : i32
    %74 = arith.muli %71, %c-2048144777_i32_25 : i32
    %75 = arith.xori %73, %74 : i32
    %c-1028477379_i32_26 = arith.constant -1028477379 : i32
    %76 = vector.broadcast %c-1028477379_i32_26 : i32 to vector<1x1x128xi32>
    %77 = arith.muli %72, %76 : vector<1x1x128xi32>
    %78 = vector.broadcast %75 : i32 to vector<1x1x128xi32>
    %79 = arith.xori %78, %77 : vector<1x1x128xi32>
    %c16_i32_27 = arith.constant 16 : i32
    %80 = vector.broadcast %c16_i32_27 : i32 to vector<1x1x128xi32>
    %81 = arith.shrui %79, %80 : vector<1x1x128xi32>
    %82 = arith.xori %79, %81 : vector<1x1x128xi32>
    %c2146121005_i32_28 = arith.constant 2146121005 : i32
    %83 = vector.broadcast %c2146121005_i32_28 : i32 to vector<1x1x128xi32>
    %84 = arith.muli %82, %83 : vector<1x1x128xi32>
    %c15_i32_29 = arith.constant 15 : i32
    %85 = vector.broadcast %c15_i32_29 : i32 to vector<1x1x128xi32>
    %86 = arith.shrui %84, %85 : vector<1x1x128xi32>
    %87 = arith.xori %84, %86 : vector<1x1x128xi32>
    %c-2073254261_i32_30 = arith.constant -2073254261 : i32
    %88 = vector.broadcast %c-2073254261_i32_30 : i32 to vector<1x1x128xi32>
    %89 = arith.muli %87, %88 : vector<1x1x128xi32>
    %c16_i32_31 = arith.constant 16 : i32
    %90 = vector.broadcast %c16_i32_31 : i32 to vector<1x1x128xi32>
    %91 = arith.shrui %89, %90 : vector<1x1x128xi32>
    %92 = arith.xori %89, %91 : vector<1x1x128xi32>
    %c8_i32_32 = arith.constant 8 : i32
    %93 = vector.broadcast %c8_i32_32 : i32 to vector<1x1x128xi32>
    %94 = arith.shrui %92, %93 : vector<1x1x128xi32>
    %c8388608_i32_33 = arith.constant 8388608 : i32
    %95 = vector.broadcast %c8388608_i32_33 : i32 to vector<1x1x128xi32>
    %96 = arith.cmpi sge, %94, %95 : vector<1x1x128xi32>
    %cst_34 = arith.constant 2.000000e+00 : f32
    %97 = vector.broadcast %cst_34 : f32 to vector<1x1x128xf32>
    %98 = arith.mulf %68, %97 : vector<1x1x128xf32>
    %cst_35 = arith.constant 0.000000e+00 : f32
    %99 = vector.broadcast %cst_35 : f32 to vector<1x1x128xf32>
    %100 = arith.select %96, %98, %99 : vector<1x1x128xi1>, vector<1x1x128xf32>
    %c0_36 = arith.constant 0 : index
    %c0_37 = arith.constant 0 : index
    %c0_38 = arith.constant 0 : index
    %101 = vector.load %arg6[%c0_36, %c0_37, %c0_38] : memref<1x1x128xf32, #tpu.memory_space<vmem>>, vector<1x1x128xf32>
    %c3_i32 = arith.constant 3 : i32
    %102 = arith.addi %0, %c3_i32 : i32
    %103 = arith.index_cast %102 : i32 to index
    %104 = memref.load %arg1[%103] : memref<16xi32, #tpu.memory_space<smem>>
    %105 = tpu.iota {dimensions = array<i32: 2>} : vector<1x1x128xi32>
    %c-1640531535_i32_39 = arith.constant -1640531535 : i32
    %106 = arith.muli %1, %c-1640531535_i32_39 : i32
    %c-2048144777_i32_40 = arith.constant -2048144777 : i32
    %107 = arith.muli %104, %c-2048144777_i32_40 : i32
    %108 = arith.xori %106, %107 : i32
    %c-1028477379_i32_41 = arith.constant -1028477379 : i32
    %109 = vector.broadcast %c-1028477379_i32_41 : i32 to vector<1x1x128xi32>
    %110 = arith.muli %105, %109 : vector<1x1x128xi32>
    %111 = vector.broadcast %108 : i32 to vector<1x1x128xi32>
    %112 = arith.xori %111, %110 : vector<1x1x128xi32>
    %c16_i32_42 = arith.constant 16 : i32
    %113 = vector.broadcast %c16_i32_42 : i32 to vector<1x1x128xi32>
    %114 = arith.shrui %112, %113 : vector<1x1x128xi32>
    %115 = arith.xori %112, %114 : vector<1x1x128xi32>
    %c2146121005_i32_43 = arith.constant 2146121005 : i32
    %116 = vector.broadcast %c2146121005_i32_43 : i32 to vector<1x1x128xi32>
    %117 = arith.muli %115, %116 : vector<1x1x128xi32>
    %c15_i32_44 = arith.constant 15 : i32
    %118 = vector.broadcast %c15_i32_44 : i32 to vector<1x1x128xi32>
    %119 = arith.shrui %117, %118 : vector<1x1x128xi32>
    %120 = arith.xori %117, %119 : vector<1x1x128xi32>
    %c-2073254261_i32_45 = arith.constant -2073254261 : i32
    %121 = vector.broadcast %c-2073254261_i32_45 : i32 to vector<1x1x128xi32>
    %122 = arith.muli %120, %121 : vector<1x1x128xi32>
    %c16_i32_46 = arith.constant 16 : i32
    %123 = vector.broadcast %c16_i32_46 : i32 to vector<1x1x128xi32>
    %124 = arith.shrui %122, %123 : vector<1x1x128xi32>
    %125 = arith.xori %122, %124 : vector<1x1x128xi32>
    %c8_i32_47 = arith.constant 8 : i32
    %126 = vector.broadcast %c8_i32_47 : i32 to vector<1x1x128xi32>
    %127 = arith.shrui %125, %126 : vector<1x1x128xi32>
    %c8388608_i32_48 = arith.constant 8388608 : i32
    %128 = vector.broadcast %c8388608_i32_48 : i32 to vector<1x1x128xi32>
    %129 = arith.cmpi sge, %127, %128 : vector<1x1x128xi32>
    %cst_49 = arith.constant 2.000000e+00 : f32
    %130 = vector.broadcast %cst_49 : f32 to vector<1x1x128xf32>
    %131 = arith.mulf %101, %130 : vector<1x1x128xf32>
    %cst_50 = arith.constant 0.000000e+00 : f32
    %132 = vector.broadcast %cst_50 : f32 to vector<1x1x128xf32>
    %133 = arith.select %129, %131, %132 : vector<1x1x128xi1>, vector<1x1x128xf32>
    %c0_51 = arith.constant 0 : index
    %c0_52 = arith.constant 0 : index
    %c0_53 = arith.constant 0 : index
    %134 = vector.load %arg7[%c0_51, %c0_52, %c0_53] : memref<1x1x128xf32, #tpu.memory_space<vmem>>, vector<1x1x128xf32>
    %c4_i32 = arith.constant 4 : i32
    %135 = arith.addi %0, %c4_i32 : i32
    %136 = arith.index_cast %135 : i32 to index
    %137 = memref.load %arg1[%136] : memref<16xi32, #tpu.memory_space<smem>>
    %138 = tpu.iota {dimensions = array<i32: 2>} : vector<1x1x128xi32>
    %c-1640531535_i32_54 = arith.constant -1640531535 : i32
    %139 = arith.muli %1, %c-1640531535_i32_54 : i32
    %c-2048144777_i32_55 = arith.constant -2048144777 : i32
    %140 = arith.muli %137, %c-2048144777_i32_55 : i32
    %141 = arith.xori %139, %140 : i32
    %c-1028477379_i32_56 = arith.constant -1028477379 : i32
    %142 = vector.broadcast %c-1028477379_i32_56 : i32 to vector<1x1x128xi32>
    %143 = arith.muli %138, %142 : vector<1x1x128xi32>
    %144 = vector.broadcast %141 : i32 to vector<1x1x128xi32>
    %145 = arith.xori %144, %143 : vector<1x1x128xi32>
    %c16_i32_57 = arith.constant 16 : i32
    %146 = vector.broadcast %c16_i32_57 : i32 to vector<1x1x128xi32>
    %147 = arith.shrui %145, %146 : vector<1x1x128xi32>
    %148 = arith.xori %145, %147 : vector<1x1x128xi32>
    %c2146121005_i32_58 = arith.constant 2146121005 : i32
    %149 = vector.broadcast %c2146121005_i32_58 : i32 to vector<1x1x128xi32>
    %150 = arith.muli %148, %149 : vector<1x1x128xi32>
    %c15_i32_59 = arith.constant 15 : i32
    %151 = vector.broadcast %c15_i32_59 : i32 to vector<1x1x128xi32>
    %152 = arith.shrui %150, %151 : vector<1x1x128xi32>
    %153 = arith.xori %150, %152 : vector<1x1x128xi32>
    %c-2073254261_i32_60 = arith.constant -2073254261 : i32
    %154 = vector.broadcast %c-2073254261_i32_60 : i32 to vector<1x1x128xi32>
    %155 = arith.muli %153, %154 : vector<1x1x128xi32>
    %c16_i32_61 = arith.constant 16 : i32
    %156 = vector.broadcast %c16_i32_61 : i32 to vector<1x1x128xi32>
    %157 = arith.shrui %155, %156 : vector<1x1x128xi32>
    %158 = arith.xori %155, %157 : vector<1x1x128xi32>
    %c8_i32_62 = arith.constant 8 : i32
    %159 = vector.broadcast %c8_i32_62 : i32 to vector<1x1x128xi32>
    %160 = arith.shrui %158, %159 : vector<1x1x128xi32>
    %c8388608_i32_63 = arith.constant 8388608 : i32
    %161 = vector.broadcast %c8388608_i32_63 : i32 to vector<1x1x128xi32>
    %162 = arith.cmpi sge, %160, %161 : vector<1x1x128xi32>
    %cst_64 = arith.constant 2.000000e+00 : f32
    %163 = vector.broadcast %cst_64 : f32 to vector<1x1x128xf32>
    %164 = arith.mulf %134, %163 : vector<1x1x128xf32>
    %cst_65 = arith.constant 0.000000e+00 : f32
    %165 = vector.broadcast %cst_65 : f32 to vector<1x1x128xf32>
    %166 = arith.select %162, %164, %165 : vector<1x1x128xi1>, vector<1x1x128xf32>
    %c0_66 = arith.constant 0 : index
    %c0_67 = arith.constant 0 : index
    %c0_68 = arith.constant 0 : index
    %167 = vector.load %arg8[%c0_66, %c0_67, %c0_68] : memref<1x1x128xf32, #tpu.memory_space<vmem>>, vector<1x1x128xf32>
    %c5_i32 = arith.constant 5 : i32
    %168 = arith.addi %0, %c5_i32 : i32
    %169 = arith.index_cast %168 : i32 to index
    %170 = memref.load %arg1[%169] : memref<16xi32, #tpu.memory_space<smem>>
    %171 = tpu.iota {dimensions = array<i32: 2>} : vector<1x1x128xi32>
    %c-1640531535_i32_69 = arith.constant -1640531535 : i32
    %172 = arith.muli %1, %c-1640531535_i32_69 : i32
    %c-2048144777_i32_70 = arith.constant -2048144777 : i32
    %173 = arith.muli %170, %c-2048144777_i32_70 : i32
    %174 = arith.xori %172, %173 : i32
    %c-1028477379_i32_71 = arith.constant -1028477379 : i32
    %175 = vector.broadcast %c-1028477379_i32_71 : i32 to vector<1x1x128xi32>
    %176 = arith.muli %171, %175 : vector<1x1x128xi32>
    %177 = vector.broadcast %174 : i32 to vector<1x1x128xi32>
    %178 = arith.xori %177, %176 : vector<1x1x128xi32>
    %c16_i32_72 = arith.constant 16 : i32
    %179 = vector.broadcast %c16_i32_72 : i32 to vector<1x1x128xi32>
    %180 = arith.shrui %178, %179 : vector<1x1x128xi32>
    %181 = arith.xori %178, %180 : vector<1x1x128xi32>
    %c2146121005_i32_73 = arith.constant 2146121005 : i32
    %182 = vector.broadcast %c2146121005_i32_73 : i32 to vector<1x1x128xi32>
    %183 = arith.muli %181, %182 : vector<1x1x128xi32>
    %c15_i32_74 = arith.constant 15 : i32
    %184 = vector.broadcast %c15_i32_74 : i32 to vector<1x1x128xi32>
    %185 = arith.shrui %183, %184 : vector<1x1x128xi32>
    %186 = arith.xori %183, %185 : vector<1x1x128xi32>
    %c-2073254261_i32_75 = arith.constant -2073254261 : i32
    %187 = vector.broadcast %c-2073254261_i32_75 : i32 to vector<1x1x128xi32>
    %188 = arith.muli %186, %187 : vector<1x1x128xi32>
    %c16_i32_76 = arith.constant 16 : i32
    %189 = vector.broadcast %c16_i32_76 : i32 to vector<1x1x128xi32>
    %190 = arith.shrui %188, %189 : vector<1x1x128xi32>
    %191 = arith.xori %188, %190 : vector<1x1x128xi32>
    %c8_i32_77 = arith.constant 8 : i32
    %192 = vector.broadcast %c8_i32_77 : i32 to vector<1x1x128xi32>
    %193 = arith.shrui %191, %192 : vector<1x1x128xi32>
    %c8388608_i32_78 = arith.constant 8388608 : i32
    %194 = vector.broadcast %c8388608_i32_78 : i32 to vector<1x1x128xi32>
    %195 = arith.cmpi sge, %193, %194 : vector<1x1x128xi32>
    %cst_79 = arith.constant 2.000000e+00 : f32
    %196 = vector.broadcast %cst_79 : f32 to vector<1x1x128xf32>
    %197 = arith.mulf %167, %196 : vector<1x1x128xf32>
    %cst_80 = arith.constant 0.000000e+00 : f32
    %198 = vector.broadcast %cst_80 : f32 to vector<1x1x128xf32>
    %199 = arith.select %195, %197, %198 : vector<1x1x128xi1>, vector<1x1x128xf32>
    %c0_81 = arith.constant 0 : index
    %c0_82 = arith.constant 0 : index
    %c0_83 = arith.constant 0 : index
    %200 = vector.load %arg9[%c0_81, %c0_82, %c0_83] : memref<1x1x128xf32, #tpu.memory_space<vmem>>, vector<1x1x128xf32>
    %c6_i32 = arith.constant 6 : i32
    %201 = arith.addi %0, %c6_i32 : i32
    %202 = arith.index_cast %201 : i32 to index
    %203 = memref.load %arg1[%202] : memref<16xi32, #tpu.memory_space<smem>>
    %204 = tpu.iota {dimensions = array<i32: 2>} : vector<1x1x128xi32>
    %c-1640531535_i32_84 = arith.constant -1640531535 : i32
    %205 = arith.muli %1, %c-1640531535_i32_84 : i32
    %c-2048144777_i32_85 = arith.constant -2048144777 : i32
    %206 = arith.muli %203, %c-2048144777_i32_85 : i32
    %207 = arith.xori %205, %206 : i32
    %c-1028477379_i32_86 = arith.constant -1028477379 : i32
    %208 = vector.broadcast %c-1028477379_i32_86 : i32 to vector<1x1x128xi32>
    %209 = arith.muli %204, %208 : vector<1x1x128xi32>
    %210 = vector.broadcast %207 : i32 to vector<1x1x128xi32>
    %211 = arith.xori %210, %209 : vector<1x1x128xi32>
    %c16_i32_87 = arith.constant 16 : i32
    %212 = vector.broadcast %c16_i32_87 : i32 to vector<1x1x128xi32>
    %213 = arith.shrui %211, %212 : vector<1x1x128xi32>
    %214 = arith.xori %211, %213 : vector<1x1x128xi32>
    %c2146121005_i32_88 = arith.constant 2146121005 : i32
    %215 = vector.broadcast %c2146121005_i32_88 : i32 to vector<1x1x128xi32>
    %216 = arith.muli %214, %215 : vector<1x1x128xi32>
    %c15_i32_89 = arith.constant 15 : i32
    %217 = vector.broadcast %c15_i32_89 : i32 to vector<1x1x128xi32>
    %218 = arith.shrui %216, %217 : vector<1x1x128xi32>
    %219 = arith.xori %216, %218 : vector<1x1x128xi32>
    %c-2073254261_i32_90 = arith.constant -2073254261 : i32
    %220 = vector.broadcast %c-2073254261_i32_90 : i32 to vector<1x1x128xi32>
    %221 = arith.muli %219, %220 : vector<1x1x128xi32>
    %c16_i32_91 = arith.constant 16 : i32
    %222 = vector.broadcast %c16_i32_91 : i32 to vector<1x1x128xi32>
    %223 = arith.shrui %221, %222 : vector<1x1x128xi32>
    %224 = arith.xori %221, %223 : vector<1x1x128xi32>
    %c8_i32_92 = arith.constant 8 : i32
    %225 = vector.broadcast %c8_i32_92 : i32 to vector<1x1x128xi32>
    %226 = arith.shrui %224, %225 : vector<1x1x128xi32>
    %c8388608_i32_93 = arith.constant 8388608 : i32
    %227 = vector.broadcast %c8388608_i32_93 : i32 to vector<1x1x128xi32>
    %228 = arith.cmpi sge, %226, %227 : vector<1x1x128xi32>
    %cst_94 = arith.constant 2.000000e+00 : f32
    %229 = vector.broadcast %cst_94 : f32 to vector<1x1x128xf32>
    %230 = arith.mulf %200, %229 : vector<1x1x128xf32>
    %cst_95 = arith.constant 0.000000e+00 : f32
    %231 = vector.broadcast %cst_95 : f32 to vector<1x1x128xf32>
    %232 = arith.select %228, %230, %231 : vector<1x1x128xi1>, vector<1x1x128xf32>
    %c0_96 = arith.constant 0 : index
    %c0_97 = arith.constant 0 : index
    %c0_98 = arith.constant 0 : index
    %233 = vector.load %arg10[%c0_96, %c0_97, %c0_98] : memref<1x1x128xf32, #tpu.memory_space<vmem>>, vector<1x1x128xf32>
    %c7_i32 = arith.constant 7 : i32
    %234 = arith.addi %0, %c7_i32 : i32
    %235 = arith.index_cast %234 : i32 to index
    %236 = memref.load %arg1[%235] : memref<16xi32, #tpu.memory_space<smem>>
    %237 = tpu.iota {dimensions = array<i32: 2>} : vector<1x1x128xi32>
    %c-1640531535_i32_99 = arith.constant -1640531535 : i32
    %238 = arith.muli %1, %c-1640531535_i32_99 : i32
    %c-2048144777_i32_100 = arith.constant -2048144777 : i32
    %239 = arith.muli %236, %c-2048144777_i32_100 : i32
    %240 = arith.xori %238, %239 : i32
    %c-1028477379_i32_101 = arith.constant -1028477379 : i32
    %241 = vector.broadcast %c-1028477379_i32_101 : i32 to vector<1x1x128xi32>
    %242 = arith.muli %237, %241 : vector<1x1x128xi32>
    %243 = vector.broadcast %240 : i32 to vector<1x1x128xi32>
    %244 = arith.xori %243, %242 : vector<1x1x128xi32>
    %c16_i32_102 = arith.constant 16 : i32
    %245 = vector.broadcast %c16_i32_102 : i32 to vector<1x1x128xi32>
    %246 = arith.shrui %244, %245 : vector<1x1x128xi32>
    %247 = arith.xori %244, %246 : vector<1x1x128xi32>
    %c2146121005_i32_103 = arith.constant 2146121005 : i32
    %248 = vector.broadcast %c2146121005_i32_103 : i32 to vector<1x1x128xi32>
    %249 = arith.muli %247, %248 : vector<1x1x128xi32>
    %c15_i32_104 = arith.constant 15 : i32
    %250 = vector.broadcast %c15_i32_104 : i32 to vector<1x1x128xi32>
    %251 = arith.shrui %249, %250 : vector<1x1x128xi32>
    %252 = arith.xori %249, %251 : vector<1x1x128xi32>
    %c-2073254261_i32_105 = arith.constant -2073254261 : i32
    %253 = vector.broadcast %c-2073254261_i32_105 : i32 to vector<1x1x128xi32>
    %254 = arith.muli %252, %253 : vector<1x1x128xi32>
    %c16_i32_106 = arith.constant 16 : i32
    %255 = vector.broadcast %c16_i32_106 : i32 to vector<1x1x128xi32>
    %256 = arith.shrui %254, %255 : vector<1x1x128xi32>
    %257 = arith.xori %254, %256 : vector<1x1x128xi32>
    %c8_i32_107 = arith.constant 8 : i32
    %258 = vector.broadcast %c8_i32_107 : i32 to vector<1x1x128xi32>
    %259 = arith.shrui %257, %258 : vector<1x1x128xi32>
    %c8388608_i32_108 = arith.constant 8388608 : i32
    %260 = vector.broadcast %c8388608_i32_108 : i32 to vector<1x1x128xi32>
    %261 = arith.cmpi sge, %259, %260 : vector<1x1x128xi32>
    %cst_109 = arith.constant 2.000000e+00 : f32
    %262 = vector.broadcast %cst_109 : f32 to vector<1x1x128xf32>
    %263 = arith.mulf %233, %262 : vector<1x1x128xf32>
    %cst_110 = arith.constant 0.000000e+00 : f32
    %264 = vector.broadcast %cst_110 : f32 to vector<1x1x128xf32>
    %265 = arith.select %261, %263, %264 : vector<1x1x128xi1>, vector<1x1x128xf32>
    %266 = tpu.concatenate %34, %67, %100, %133, %166, %199, %232, %265 in 1 : vector<1x1x128xf32>, vector<1x1x128xf32>, vector<1x1x128xf32>, vector<1x1x128xf32>, vector<1x1x128xf32>, vector<1x1x128xf32>, vector<1x1x128xf32>, vector<1x1x128xf32> -> vector<1x8x128xf32>
    %c0_111 = arith.constant 0 : index
    %c0_112 = arith.constant 0 : index
    %c0_113 = arith.constant 0 : index
    %267 = vector.load %arg11[%c0_111, %c0_112, %c0_113] : memref<1x8x128xf32, #tpu.memory_space<vmem>>, vector<1x8x128xf32>
    tpu.vector_store %arg11[%c0_111, %c0_112, %c0_113], %266 {strides = array<i32>} : memref<1x8x128xf32, #tpu.memory_space<vmem>>, vector<1x8x128xf32>,
    return
  }
  func.func @transform_0(%arg0: i32, %arg1: memref<16xi32, #tpu.memory_space<smem>>, %arg2: memref<1xi32, #tpu.memory_space<smem>>) -> (i32, i32, i32) {
    %c8_i32 = arith.constant 8 : i32
    %0 = arith.muli %arg0, %c8_i32 : i32
    %c0_i32 = arith.constant 0 : i32
    %1 = arith.addi %0, %c0_i32 : i32
    %2 = arith.index_cast %1 : i32 to index
    %3 = memref.load %arg1[%2] : memref<16xi32, #tpu.memory_space<smem>>
    %c0_i32_0 = arith.constant 0 : i32
    %c0_i32_1 = arith.constant 0 : i32
    %c0_i32_2 = arith.constant 0 : i32
    return %3, %c0_i32_0, %c0_i32_1 : i32, i32, i32
  }
  func.func @transform_1(%arg0: i32, %arg1: memref<16xi32, #tpu.memory_space<smem>>, %arg2: memref<1xi32, #tpu.memory_space<smem>>) -> (i32, i32, i32) {
    %c8_i32 = arith.constant 8 : i32
    %0 = arith.muli %arg0, %c8_i32 : i32
    %c1_i32 = arith.constant 1 : i32
    %1 = arith.addi %0, %c1_i32 : i32
    %2 = arith.index_cast %1 : i32 to index
    %3 = memref.load %arg1[%2] : memref<16xi32, #tpu.memory_space<smem>>
    %c0_i32 = arith.constant 0 : i32
    %c0_i32_0 = arith.constant 0 : i32
    %c0_i32_1 = arith.constant 0 : i32
    return %3, %c0_i32, %c0_i32_0 : i32, i32, i32
  }
  func.func @transform_2(%arg0: i32, %arg1: memref<16xi32, #tpu.memory_space<smem>>, %arg2: memref<1xi32, #tpu.memory_space<smem>>) -> (i32, i32, i32) {
    %c8_i32 = arith.constant 8 : i32
    %0 = arith.muli %arg0, %c8_i32 : i32
    %c2_i32 = arith.constant 2 : i32
    %1 = arith.addi %0, %c2_i32 : i32
    %2 = arith.index_cast %1 : i32 to index
    %3 = memref.load %arg1[%2] : memref<16xi32, #tpu.memory_space<smem>>
    %c0_i32 = arith.constant 0 : i32
    %c0_i32_0 = arith.constant 0 : i32
    %c0_i32_1 = arith.constant 0 : i32
    return %3, %c0_i32, %c0_i32_0 : i32, i32, i32
  }
  func.func @transform_3(%arg0: i32, %arg1: memref<16xi32, #tpu.memory_space<smem>>, %arg2: memref<1xi32, #tpu.memory_space<smem>>) -> (i32, i32, i32) {
    %c8_i32 = arith.constant 8 : i32
    %0 = arith.muli %arg0, %c8_i32 : i32
    %c3_i32 = arith.constant 3 : i32
    %1 = arith.addi %0, %c3_i32 : i32
    %2 = arith.index_cast %1 : i32 to index
    %3 = memref.load %arg1[%2] : memref<16xi32, #tpu.memory_space<smem>>
    %c0_i32 = arith.constant 0 : i32
    %c0_i32_0 = arith.constant 0 : i32
    %c0_i32_1 = arith.constant 0 : i32
    return %3, %c0_i32, %c0_i32_0 : i32, i32, i32
  }
  func.func @transform_4(%arg0: i32, %arg1: memref<16xi32, #tpu.memory_space<smem>>, %arg2: memref<1xi32, #tpu.memory_space<smem>>) -> (i32, i32, i32) {
    %c8_i32 = arith.constant 8 : i32
    %0 = arith.muli %arg0, %c8_i32 : i32
    %c4_i32 = arith.constant 4 : i32
    %1 = arith.addi %0, %c4_i32 : i32
    %2 = arith.index_cast %1 : i32 to index
    %3 = memref.load %arg1[%2] : memref<16xi32, #tpu.memory_space<smem>>
    %c0_i32 = arith.constant 0 : i32
    %c0_i32_0 = arith.constant 0 : i32
    %c0_i32_1 = arith.constant 0 : i32
    return %3, %c0_i32, %c0_i32_0 : i32, i32, i32
  }
  func.func @transform_5(%arg0: i32, %arg1: memref<16xi32, #tpu.memory_space<smem>>, %arg2: memref<1xi32, #tpu.memory_space<smem>>) -> (i32, i32, i32) {
    %c8_i32 = arith.constant 8 : i32
    %0 = arith.muli %arg0, %c8_i32 : i32
    %c5_i32 = arith.constant 5 : i32
    %1 = arith.addi %0, %c5_i32 : i32
    %2 = arith.index_cast %1 : i32 to index
    %3 = memref.load %arg1[%2] : memref<16xi32, #tpu.memory_space<smem>>
    %c0_i32 = arith.constant 0 : i32
    %c0_i32_0 = arith.constant 0 : i32
    %c0_i32_1 = arith.constant 0 : i32
    return %3, %c0_i32, %c0_i32_0 : i32, i32, i32
  }
  func.func @transform_6(%arg0: i32, %arg1: memref<16xi32, #tpu.memory_space<smem>>, %arg2: memref<1xi32, #tpu.memory_space<smem>>) -> (i32, i32, i32) {
    %c8_i32 = arith.constant 8 : i32
    %0 = arith.muli %arg0, %c8_i32 : i32
    %c6_i32 = arith.constant 6 : i32
    %1 = arith.addi %0, %c6_i32 : i32
    %2 = arith.index_cast %1 : i32 to index
    %3 = memref.load %arg1[%2] : memref<16xi32, #tpu.memory_space<smem>>
    %c0_i32 = arith.constant 0 : i32
    %c0_i32_0 = arith.constant 0 : i32
    %c0_i32_1 = arith.constant 0 : i32
    return %3, %c0_i32, %c0_i32_0 : i32, i32, i32
  }
  func.func @transform_7(%arg0: i32, %arg1: memref<16xi32, #tpu.memory_space<smem>>, %arg2: memref<1xi32, #tpu.memory_space<smem>>) -> (i32, i32, i32) {
    %c8_i32 = arith.constant 8 : i32
    %0 = arith.muli %arg0, %c8_i32 : i32
    %c7_i32 = arith.constant 7 : i32
    %1 = arith.addi %0, %c7_i32 : i32
    %2 = arith.index_cast %1 : i32 to index
    %3 = memref.load %arg1[%2] : memref<16xi32, #tpu.memory_space<smem>>
    %c0_i32 = arith.constant 0 : i32
    %c0_i32_0 = arith.constant 0 : i32
    %c0_i32_1 = arith.constant 0 : i32
    return %3, %c0_i32, %c0_i32_0 : i32, i32, i32
  }
  func.func @transform_8(%arg0: i32, %arg1: memref<16xi32, #tpu.memory_space<smem>>, %arg2: memref<1xi32, #tpu.memory_space<smem>>) -> (i32, i32, i32) {
    %c0_i32 = arith.constant 0 : i32
    %c0_i32_0 = arith.constant 0 : i32
    %c0_i32_1 = arith.constant 0 : i32
    return %arg0, %c0_i32, %c0_i32_0 : i32, i32, i32
  }
}

</mosaic_0001>

<llo_original>
// kernel: embedding_dropout.1
$region0: #{embedding_dropout.1}
  #allocation0 [shape = 'u32[]', space=smem, size = 0x4, offset = 0x4, fixed_abs, tag = 'smem constant byte address 0x4 - core index']
  #allocation1 [shape = 'u32[144,128]{1,0:T(1,128)}', space=vmem, size = 0x12000, scoped, tag = 'internal scratch']
  #allocation2 [shape = 's32[1]{0}', space=sflag, size = 0x4, scoped, tag = 'scoped memory for embedding_dropout.1']
  #allocation3 [shape = 'u8[512]{0}', space=smem, size = 0x200, scoped, tag = 'prefetched SMEM operand 0']
  #allocation4 [shape = 's32[1]{0:T(128)S(6)}', space=smem, size = 0x200, scoped, tag = 'prefetched SMEM operand 1']
  %s0 = inlined_call_operand.vmem [shape: s32[16], index: 0, kind: input, shape index: {}]
  %s1 = inlined_call_operand.<no memory space> [shape: s32[1], index: 1, kind: input, shape index: {}]
  %s2 = inlined_call_operand.hbm [shape: f32[64,1,128], index: 2, kind: input, shape index: {}, may-alias: {2,3,4,5,6,7,8,9}]
  %s3 = inlined_call_operand.hbm [shape: f32[64,1,128], index: 3, kind: input, shape index: {}, may-alias: {2,3,4,5,6,7,8,9}]
  %s4 = inlined_call_operand.hbm [shape: f32[64,1,128], index: 4, kind: input, shape index: {}, may-alias: {2,3,4,5,6,7,8,9}]
  %s5 = inlined_call_operand.hbm [shape: f32[64,1,128], index: 5, kind: input, shape index: {}, may-alias: {2,3,4,5,6,7,8,9}]
  %s6 = inlined_call_operand.hbm [shape: f32[64,1,128], index: 6, kind: input, shape index: {}, may-alias: {2,3,4,5,6,7,8,9}]
  %s7 = inlined_call_operand.hbm [shape: f32[64,1,128], index: 7, kind: input, shape index: {}, may-alias: {2,3,4,5,6,7,8,9}]
  %s8 = inlined_call_operand.hbm [shape: f32[64,1,128], index: 8, kind: input, shape index: {}, may-alias: {2,3,4,5,6,7,8,9}]
  %s9 = inlined_call_operand.hbm [shape: f32[64,1,128], index: 9, kind: input, shape index: {}, may-alias: {2,3,4,5,6,7,8,9}]
  %s10 = inlined_call_operand.hbm [shape: f32[2,8,128], index: 10, kind: output, shape index: {}]
  %s11 = sld [smem:[#allocation0]]
  $region97: #{embedding_dropout.1} parent=0
    _
  %s13 = ssub.s32 1, %s11
  %s14 = scalar_select 0, %s13, %s11
  %s15 = sshll.u32 %s0, 4
  %s16 = int_to_ptr.vmem [resolvable:$true] %s15
  %18 = dma.vmem_to_smem %s16, 16, [#allocation3], [#allocation2]
  %19 = sst [smem:[#allocation4]] %s1
  %20 = dma.done [#allocation2], 16
  %21 = sfence
  $region1: #{embedding_dropout.1} parent=0
    #allocation5 [shape = 'u8[1024]{0}', space=vmem, size = 0x400, scoped, tag = 'input window, operand 2']
    #allocation6 [shape = 's32[2]{0}', space=sflag, size = 0x8, scoped, tag = 'scoped memory for embedding_dropout.1']
    #allocation7 [shape = 's32[2]{0}', space=sflag, size = 0x8, scoped, tag = 'scoped memory for embedding_dropout.1']
    #allocation8 [shape = 'u8[1024]{0}', space=vmem, size = 0x400, scoped, tag = 'input window, operand 3']
    #allocation9 [shape = 's32[2]{0}', space=sflag, size = 0x8, scoped, tag = 'scoped memory for embedding_dropout.1']
    #allocation10 [shape = 'u8[1024]{0}', space=vmem, size = 0x400, scoped, tag = 'input window, operand 4']
    #allocation11 [shape = 'u8[1024]{0}', space=vmem, size = 0x400, scoped, tag = 'input window, operand 5']
    #allocation12 [shape = 's32[2]{0}', space=sflag, size = 0x8, scoped, tag = 'scoped memory for embedding_dropout.1']
    #allocation13 [shape = 'u8[1024]{0}', space=vmem, size = 0x400, scoped, tag = 'input window, operand 6']
    #allocation14 [shape = 'u8[1024]{0}', space=vmem, size = 0x400, scoped, tag = 'input window, operand 7']
    #allocation15 [shape = 's32[2]{0}', space=sflag, size = 0x8, scoped, tag = 'scoped memory for embedding_dropout.1']
    #allocation16 [shape = 'u8[1024]{0}', space=vmem, size = 0x400, scoped, tag = 'input window, operand 8']
    #allocation17 [shape = 'u8[1024]{0}', space=vmem, size = 0x400, scoped, tag = 'input window, operand 9']
    #allocation18 [shape = 's32[2]{0}', space=sflag, size = 0x8, scoped, tag = 'scoped memory for embedding_dropout.1']
    #allocation19 [shape = 'u8[8192]{0}', space=vmem, size = 0x2000, scoped, tag = 'output window, operand 0']
    %22 = vsyncpa [#allocation6], 0
    %s23 = scalar_lea.sflag [#allocation6], 1
    %24 = vsyncpa %s23, 0
    %25 = vsyncpa [#allocation9], 0
    %s26 = scalar_lea.sflag [#allocation9], 1
    %27 = vsyncpa %s26, 0
    %28 = vsyncpa [#allocation12], 0
    %s29 = scalar_lea.sflag [#allocation12], 1
    %30 = vsyncpa %s29, 0
    %31 = vsyncpa [#allocation15], 0
    %s32 = scalar_lea.sflag [#allocation15], 1
    %33 = vsyncpa %s32, 0
    %34 = vsyncpa [#allocation18], 0
    %s35 = scalar_lea.sflag [#allocation18], 1
    %36 = vsyncpa %s35, 0
    %37 = vsyncpa [#allocation7], 0
    %s38 = scalar_lea.sflag [#allocation7], 1
    %39 = vsyncpa %s38, 0
    loop: start=0, step=1, limit=4
    $region2: #{embedding_dropout.1} parent=1 // loop_pre_header
      _
    $region3: #{embedding_dropout.1} parent=1 // loop_header
      %s41 = sphi 0, %s45
      %p42 = scmp.ge.s32.totalorder %s41, 4
      %s55 = sphi 0, %s57
      %s58 = sphi 0, %s55
      %s59 = sphi 0, %s58
      %s75 = sphi 0, %s59
      %s87 = sphi 0, %s89
      %s90 = sphi 0, %s87
      %s91 = sphi 0, %s90
      %s107 = sphi 0, %s91
      %s119 = sphi 0, %s121
      %s122 = sphi 0, %s119
      %s123 = sphi 0, %s122
      %s139 = sphi 0, %s123
      %s151 = sphi 0, %s153
      %s154 = sphi 0, %s151
      %s155 = sphi 0, %s154
      %s171 = sphi 0, %s155
      %s183 = sphi 0, %s185
      %s186 = sphi 0, %s183
      %s187 = sphi 0, %s186
      %s203 = sphi 0, %s187
      %s215 = sphi 0, %s217
      %s218 = sphi 0, %s215
      %s219 = sphi 0, %s218
      %s235 = sphi 0, %s219
      %s247 = sphi 0, %s249
      %s250 = sphi 0, %s247
      %s251 = sphi 0, %s250
      %s267 = sphi 0, %s251
      %s279 = sphi 0, %s281
      %s282 = sphi 0, %s279
      %s283 = sphi 0, %s282
      %s299 = sphi 0, %s283
      %s305 = sphi 0, %s307
      %s308 = sphi 0, %s305
      %s309 = sphi 0, %s308
      %s325 = sphi 0, %s309
    $region4: #{embedding_dropout.1} parent=1 // loop_header_branch
      %44 = sbr.rel (%p42) target = $region8
    $region5: #{embedding_dropout.1} parent=1 // loop_body
      %s46 = ssub.s32 %s41, 1
      %s47 = ssub.s32 %s41, 2
      %s48 = sadd.s32 %s41, 1
      %s49 = smul.u32 %s41, 8
      %s50 = sld [smem:[#allocation3 + %s49]]
      %s51 = smul.u32 %s48, 8
      %s52 = sld [smem:[#allocation3 + %s51]]
      %s53 = ssub.s32 %s50, %s52
      %p54 = scmp.eq.s32.totalorder %s53, 0
      %s56 = sadd.s32 %s55, 1
      %s57 = scalar_select %p54, %s55, %s56
      %p60 = pneg %p54
      %p61 = scmp.eq.s32.totalorder %s41, 1
      %p62 = por %p60, %p61
      %p63 = scmp.ne.s32.totalorder %s55, %s58
      %p64 = scmp.eq.s32.totalorder %s41, 0
      %p65 = por %p63, %p64
      %p66 = scmp.ne.s32.totalorder %s55, %s58
      %p67 = scmp.eq.s32.totalorder %s46, 1
      %p68 = por %p66, %p67
      %p69 = scmp.ne.s32.totalorder %s58, %s59
      %p70 = scmp.eq.s32.totalorder %s46, 0
      %p71 = por %p69, %p70
      %p72 = scmp.ne.s32.totalorder %s58, %s59
      %p73 = scmp.eq.s32.totalorder %s47, 1
      %p74 = por %p72, %p73
      %p76 = scmp.ne.s32.totalorder %s59, %s75
      %p77 = scmp.eq.s32.totalorder %s47, 0
      %p78 = por %p76, %p77
      %s79 = smul.u32 %s41, 8
      %s80 = sadd.s32 %s79, 1
      %s81 = sld [smem:[#allocation3 + %s80]]
      %s82 = smul.u32 %s48, 8
      %s83 = sadd.s32 %s82, 1
      %s84 = sld [smem:[#allocation3 + %s83]]
      %s85 = ssub.s32 %s81, %s84
      %p86 = scmp.eq.s32.totalorder %s85, 0
      %s88 = sadd.s32 %s87, 1
      %s89 = scalar_select %p86, %s87, %s88
      %p92 = pneg %p86
      %p93 = scmp.eq.s32.totalorder %s41, 1
      %p94 = por %p92, %p93
      %p95 = scmp.ne.s32.totalorder %s87, %s90
      %p96 = scmp.eq.s32.totalorder %s41, 0
      %p97 = por %p95, %p96
      %p98 = scmp.ne.s32.totalorder %s87, %s90
      %p99 = scmp.eq.s32.totalorder %s46, 1
      %p100 = por %p98, %p99
      %p101 = scmp.ne.s32.totalorder %s90, %s91
      %p102 = scmp.eq.s32.totalorder %s46, 0
      %p103 = por %p101, %p102
      %p104 = scmp.ne.s32.totalorder %s90, %s91
      %p105 = scmp.eq.s32.totalorder %s47, 1
      %p106 = por %p104, %p105
      %p108 = scmp.ne.s32.totalorder %s91, %s107
      %p109 = scmp.eq.s32.totalorder %s47, 0
      %p110 = por %p108, %p109
      %s111 = smul.u32 %s41, 8
      %s112 = sadd.s32 %s111, 2
      %s113 = sld [smem:[#allocation3 + %s112]]
      %s114 = smul.u32 %s48, 8
      %s115 = sadd.s32 %s114, 2
      %s116 = sld [smem:[#allocation3 + %s115]]
      %s117 = ssub.s32 %s113, %s116
      %p118 = scmp.eq.s32.totalorder %s117, 0
      %s120 = sadd.s32 %s119, 1
      %s121 = scalar_select %p118, %s119, %s120
      %p124 = pneg %p118
      %p125 = scmp.eq.s32.totalorder %s41, 1
      %p126 = por %p124, %p125
      %p127 = scmp.ne.s32.totalorder %s119, %s122
      %p128 = scmp.eq.s32.totalorder %s41, 0
      %p129 = por %p127, %p128
      %p130 = scmp.ne.s32.totalorder %s119, %s122
      %p131 = scmp.eq.s32.totalorder %s46, 1
      %p132 = por %p130, %p131
      %p133 = scmp.ne.s32.totalorder %s122, %s123
      %p134 = scmp.eq.s32.totalorder %s46, 0
      %p135 = por %p133, %p134
      %p136 = scmp.ne.s32.totalorder %s122, %s123
      %p137 = scmp.eq.s32.totalorder %s47, 1
      %p138 = por %p136, %p137
      %p140 = scmp.ne.s32.totalorder %s123, %s139
      %p141 = scmp.eq.s32.totalorder %s47, 0
      %p142 = por %p140, %p141
      %s143 = smul.u32 %s41, 8
      %s144 = sadd.s32 %s143, 3
      %s145 = sld [smem:[#allocation3 + %s144]]
      %s146 = smul.u32 %s48, 8
      %s147 = sadd.s32 %s146, 3
      %s148 = sld [smem:[#allocation3 + %s147]]
      %s149 = ssub.s32 %s145, %s148
      %p150 = scmp.eq.s32.totalorder %s149, 0
      %s152 = sadd.s32 %s151, 1
      %s153 = scalar_select %p150, %s151, %s152
      %p156 = pneg %p150
      %p157 = scmp.eq.s32.totalorder %s41, 1
      %p158 = por %p156, %p157
      %p159 = scmp.ne.s32.totalorder %s151, %s154
      %p160 = scmp.eq.s32.totalorder %s41, 0
      %p161 = por %p159, %p160
      %p162 = scmp.ne.s32.totalorder %s151, %s154
      %p163 = scmp.eq.s32.totalorder %s46, 1
      %p164 = por %p162, %p163
      %p165 = scmp.ne.s32.totalorder %s154, %s155
      %p166 = scmp.eq.s32.totalorder %s46, 0
      %p167 = por %p165, %p166
      %p168 = scmp.ne.s32.totalorder %s154, %s155
      %p169 = scmp.eq.s32.totalorder %s47, 1
      %p170 = por %p168, %p169
      %p172 = scmp.ne.s32.totalorder %s155, %s171
      %p173 = scmp.eq.s32.totalorder %s47, 0
      %p174 = por %p172, %p173
      %s175 = smul.u32 %s41, 8
      %s176 = sadd.s32 %s175, 4
      %s177 = sld [smem:[#allocation3 + %s176]]
      %s178 = smul.u32 %s48, 8
      %s179 = sadd.s32 %s178, 4
      %s180 = sld [smem:[#allocation3 + %s179]]
      %s181 = ssub.s32 %s177, %s180
      %p182 = scmp.eq.s32.totalorder %s181, 0
      %s184 = sadd.s32 %s183, 1
      %s185 = scalar_select %p182, %s183, %s184
      %p188 = pneg %p182
      %p189 = scmp.eq.s32.totalorder %s41, 1
      %p190 = por %p188, %p189
      %p191 = scmp.ne.s32.totalorder %s183, %s186
      %p192 = scmp.eq.s32.totalorder %s41, 0
      %p193 = por %p191, %p192
      %p194 = scmp.ne.s32.totalorder %s183, %s186
      %p195 = scmp.eq.s32.totalorder %s46, 1
      %p196 = por %p194, %p195
      %p197 = scmp.ne.s32.totalorder %s186, %s187
      %p198 = scmp.eq.s32.totalorder %s46, 0
      %p199 = por %p197, %p198
      %p200 = scmp.ne.s32.totalorder %s186, %s187
      %p201 = scmp.eq.s32.totalorder %s47, 1
      %p202 = por %p200, %p201
      %p204 = scmp.ne.s32.totalorder %s187, %s203
      %p205 = scmp.eq.s32.totalorder %s47, 0
      %p206 = por %p204, %p205
      %s207 = smul.u32 %s41, 8
      %s208 = sadd.s32 %s207, 5
      %s209 = sld [smem:[#allocation3 + %s208]]
      %s210 = smul.u32 %s48, 8
      %s211 = sadd.s32 %s210, 5
      %s212 = sld [smem:[#allocation3 + %s211]]
      %s213 = ssub.s32 %s209, %s212
      %p214 = scmp.eq.s32.totalorder %s213, 0
      %s216 = sadd.s32 %s215, 1
      %s217 = scalar_select %p214, %s215, %s216
      %p220 = pneg %p214
      %p221 = scmp.eq.s32.totalorder %s41, 1
      %p222 = por %p220, %p221
      %p223 = scmp.ne.s32.totalorder %s215, %s218
      %p224 = scmp.eq.s32.totalorder %s41, 0
      %p225 = por %p223, %p224
      %p226 = scmp.ne.s32.totalorder %s215, %s218
      %p227 = scmp.eq.s32.totalorder %s46, 1
      %p228 = por %p226, %p227
      %p229 = scmp.ne.s32.totalorder %s218, %s219
      %p230 = scmp.eq.s32.totalorder %s46, 0
      %p231 = por %p229, %p230
      %p232 = scmp.ne.s32.totalorder %s218, %s219
      %p233 = scmp.eq.s32.totalorder %s47, 1
      %p234 = por %p232, %p233
      %p236 = scmp.ne.s32.totalorder %s219, %s235
      %p237 = scmp.eq.s32.totalorder %s47, 0
      %p238 = por %p236, %p237
      %s239 = smul.u32 %s41, 8
      %s240 = sadd.s32 %s239, 6
      %s241 = sld [smem:[#allocation3 + %s240]]
      %s242 = smul.u32 %s48, 8
      %s243 = sadd.s32 %s242, 6
      %s244 = sld [smem:[#allocation3 + %s243]]
      %s245 = ssub.s32 %s241, %s244
      %p246 = scmp.eq.s32.totalorder %s245, 0
      %s248 = sadd.s32 %s247, 1
      %s249 = scalar_select %p246, %s247, %s248
      %p252 = pneg %p246
      %p253 = scmp.eq.s32.totalorder %s41, 1
      %p254 = por %p252, %p253
      %p255 = scmp.ne.s32.totalorder %s247, %s250
      %p256 = scmp.eq.s32.totalorder %s41, 0
      %p257 = por %p255, %p256
      %p258 = scmp.ne.s32.totalorder %s247, %s250
      %p259 = scmp.eq.s32.totalorder %s46, 1
      %p260 = por %p258, %p259
      %p261 = scmp.ne.s32.totalorder %s250, %s251
      %p262 = scmp.eq.s32.totalorder %s46, 0
      %p263 = por %p261, %p262
      %p264 = scmp.ne.s32.totalorder %s250, %s251
      %p265 = scmp.eq.s32.totalorder %s47, 1
      %p266 = por %p264, %p265
      %p268 = scmp.ne.s32.totalorder %s251, %s267
      %p269 = scmp.eq.s32.totalorder %s47, 0
      %p270 = por %p268, %p269
      %s271 = smul.u32 %s41, 8
      %s272 = sadd.s32 %s271, 7
      %s273 = sld [smem:[#allocation3 + %s272]]
      %s274 = smul.u32 %s48, 8
      %s275 = sadd.s32 %s274, 7
      %s276 = sld [smem:[#allocation3 + %s275]]
      %s277 = ssub.s32 %s273, %s276
      %p278 = scmp.eq.s32.totalorder %s277, 0
      %s280 = sadd.s32 %s279, 1
      %s281 = scalar_select %p278, %s279, %s280
      %p284 = pneg %p278
      %p285 = scmp.eq.s32.totalorder %s41, 1
      %p286 = por %p284, %p285
      %p287 = scmp.ne.s32.totalorder %s279, %s282
      %p288 = scmp.eq.s32.totalorder %s41, 0
      %p289 = por %p287, %p288
      %p290 = scmp.ne.s32.totalorder %s279, %s282
      %p291 = scmp.eq.s32.totalorder %s46, 1
      %p292 = por %p290, %p291
      %p293 = scmp.ne.s32.totalorder %s282, %s283
      %p294 = scmp.eq.s32.totalorder %s46, 0
      %p295 = por %p293, %p294
      %p296 = scmp.ne.s32.totalorder %s282, %s283
      %p297 = scmp.eq.s32.totalorder %s47, 1
      %p298 = por %p296, %p297
      %p300 = scmp.ne.s32.totalorder %s283, %s299
      %p301 = scmp.eq.s32.totalorder %s47, 0
      %p302 = por %p300, %p301
      %s303 = ssub.s32 %s41, %s48
      %p304 = scmp.eq.s32.totalorder %s303, 0
      %s306 = sadd.s32 %s305, 1
      %s307 = scalar_select %p304, %s305, %s306
      %p310 = pneg %p304
      %p311 = scmp.eq.s32.totalorder %s41, 1
      %p312 = por %p310, %p311
      %p313 = scmp.ne.s32.totalorder %s305, %s308
      %p314 = scmp.eq.s32.totalorder %s41, 0
      %p315 = por %p313, %p314
      %p316 = scmp.ne.s32.totalorder %s305, %s308
      %p317 = scmp.eq.s32.totalorder %s46, 1
      %p318 = por %p316, %p317
      %p319 = scmp.ne.s32.totalorder %s308, %s309
      %p320 = scmp.eq.s32.totalorder %s46, 0
      %p321 = por %p319, %p320
      %p322 = scmp.ne.s32.totalorder %s308, %s309
      %p323 = scmp.eq.s32.totalorder %s47, 1
      %p324 = por %p322, %p323
      %p326 = scmp.ne.s32.totalorder %s309, %s325
      %p327 = scmp.eq.s32.totalorder %s47, 0
      %p328 = por %p326, %p327
      %p329 = scmp.le.s32.totalorder 1, %s41
      %p330 = scmp.lt.s32.totalorder %s41, 3
      %p331 = pnand %p329, %p330
      %p332 = pneg %p331
      // Predicated region
      $region9: #{embedding_dropout.1} parent=5 // pred_check
        _
      $region10: #{embedding_dropout.1} parent=5 // pred_check_branch
        %334 = sbr.rel (%p331) target = $region12
      $region11: #{embedding_dropout.1} parent=5 // pred_region
        %s335 = ssub.s32 %s41, 1
      $region12: #{embedding_dropout.1} parent=5 // pred_fallthru
        _
      %p336 = scmp.lt.s32.totalorder %s41, 2
      // Predicated region
      $region13: #{embedding_dropout.1} parent=5 // pred_check
        %p337 = pneg %p336
      $region14: #{embedding_dropout.1} parent=5 // pred_check_branch
        %339 = sbr.rel (%p337) target = $region16
      $region15: #{embedding_dropout.1} parent=5 // pred_region
        // Predicated region
        $region17: #{embedding_dropout.1} parent=15 // pred_check
          %p340 = pneg %p65
        $region18: #{embedding_dropout.1} parent=15 // pred_check_branch
          %342 = sbr.rel (%p340) target = $region20
        $region19: #{embedding_dropout.1} parent=15 // pred_region
          %s343 = sand.u32 %s55, 1
          %s344 = scalar_lea.sflag [#allocation6], %s343
          %s345 = sand.u32 %s55, 1
          %s346 = scalar_lea.vmem [#allocation5], %s345
          %s347 = smul.u32 %s41, 8
          %s348 = sld [smem:[#allocation3 + %s347]]
          %s350 = ssub.s32 16, 16
          %351 = vsyncadd %s344, %s350
          %s352 = smul.addr %s348, 16
          %s353 = scalar_lea.hbm %s2, %s352
          %s355 = sshll.u32 %s346, 4
          %s356 = int_to_ptr.vmem [resolvable:$true] %s355
          %358 = dma.hbm_to_vmem [thread:$0]  %s353, 16, %s356, %s344
        $region20: #{embedding_dropout.1} parent=15 // pred_fallthru
          _
        // Predicated region
        $region21: #{embedding_dropout.1} parent=15 // pred_check
          %p359 = pneg %p97
        $region22: #{embedding_dropout.1} parent=15 // pred_check_branch
          %361 = sbr.rel (%p359) target = $region24
        $region23: #{embedding_dropout.1} parent=15 // pred_region
          %s362 = sand.u32 %s41, 1
          %s363 = scalar_lea.sflag [#allocation9], %s362
          %s364 = sand.u32 %s87, 1
          %s365 = scalar_lea.vmem [#allocation8], %s364
          %s366 = smul.u32 %s41, 8
          %s367 = sadd.s32 %s366, 1
          %s368 = sld [smem:[#allocation3 + %s367]]
          %s370 = ssub.s32 16, 16
          %371 = vsyncadd %s363, %s370
          %s372 = smul.addr %s368, 16
          %s373 = scalar_lea.hbm %s3, %s372
          %s375 = sshll.u32 %s365, 4
          %s376 = int_to_ptr.vmem [resolvable:$true] %s375
          %378 = dma.hbm_to_vmem [thread:$0]  %s373, 16, %s376, %s363
        $region24: #{embedding_dropout.1} parent=15 // pred_fallthru
          _
        // Predicated region
        $region25: #{embedding_dropout.1} parent=15 // pred_check
          %p379 = pneg %p129
        $region26: #{embedding_dropout.1} parent=15 // pred_check_branch
          %381 = sbr.rel (%p379) target = $region28
        $region27: #{embedding_dropout.1} parent=15 // pred_region
          %s382 = sand.u32 %s41, 1
          %s383 = scalar_lea.sflag [#allocation9], %s382
          %s384 = sand.u32 %s119, 1
          %s385 = scalar_lea.vmem [#allocation10], %s384
          %s386 = smul.u32 %s41, 8
          %s387 = sadd.s32 %s386, 2
          %s388 = sld [smem:[#allocation3 + %s387]]
          %s390 = ssub.s32 16, 16
          %391 = vsyncadd %s383, %s390
          %s392 = smul.addr %s388, 16
          %s393 = scalar_lea.hbm %s4, %s392
          %s395 = sshll.u32 %s385, 4
          %s396 = int_to_ptr.vmem [resolvable:$true] %s395
          %398 = dma.hbm_to_vmem [thread:$0]  %s393, 16, %s396, %s383
        $region28: #{embedding_dropout.1} parent=15 // pred_fallthru
          _
        // Predicated region
        $region29: #{embedding_dropout.1} parent=15 // pred_check
          %p399 = pneg %p161
        $region30: #{embedding_dropout.1} parent=15 // pred_check_branch
          %401 = sbr.rel (%p399) target = $region32
        $region31: #{embedding_dropout.1} parent=15 // pred_region
          %s402 = sand.u32 %s41, 1
          %s403 = scalar_lea.sflag [#allocation12], %s402
          %s404 = sand.u32 %s151, 1
          %s405 = scalar_lea.vmem [#allocation11], %s404
          %s406 = smul.u32 %s41, 8
          %s407 = sadd.s32 %s406, 3
          %s408 = sld [smem:[#allocation3 + %s407]]
          %s410 = ssub.s32 16, 16
          %411 = vsyncadd %s403, %s410
          %s412 = smul.addr %s408, 16
          %s413 = scalar_lea.hbm %s5, %s412
          %s415 = sshll.u32 %s405, 4
          %s416 = int_to_ptr.vmem [resolvable:$true] %s415
          %418 = dma.hbm_to_vmem [thread:$0]  %s413, 16, %s416, %s403
        $region32: #{embedding_dropout.1} parent=15 // pred_fallthru
          _
        // Predicated region
        $region33: #{embedding_dropout.1} parent=15 // pred_check
          %p419 = pneg %p193
        $region34: #{embedding_dropout.1} parent=15 // pred_check_branch
          %421 = sbr.rel (%p419) target = $region36
        $region35: #{embedding_dropout.1} parent=15 // pred_region
          %s422 = sand.u32 %s41, 1
          %s423 = scalar_lea.sflag [#allocation12], %s422
          %s424 = sand.u32 %s183, 1
          %s425 = scalar_lea.vmem [#allocation13], %s424
          %s426 = smul.u32 %s41, 8
          %s427 = sadd.s32 %s426, 4
          %s428 = sld [smem:[#allocation3 + %s427]]
          %s430 = ssub.s32 16, 16
          %431 = vsyncadd %s423, %s430
          %s432 = smul.addr %s428, 16
          %s433 = scalar_lea.hbm %s6, %s432
          %s435 = sshll.u32 %s425, 4
          %s436 = int_to_ptr.vmem [resolvable:$true] %s435
          %438 = dma.hbm_to_vmem [thread:$0]  %s433, 16, %s436, %s423
        $region36: #{embedding_dropout.1} parent=15 // pred_fallthru
          _
        // Predicated region
        $region37: #{embedding_dropout.1} parent=15 // pred_check
          %p439 = pneg %p225
        $region38: #{embedding_dropout.1} parent=15 // pred_check_branch
          %441 = sbr.rel (%p439) target = $region40
        $region39: #{embedding_dropout.1} parent=15 // pred_region
          %s442 = sand.u32 %s41, 1
          %s443 = scalar_lea.sflag [#allocation15], %s442
          %s444 = sand.u32 %s215, 1
          %s445 = scalar_lea.vmem [#allocation14], %s444
          %s446 = smul.u32 %s41, 8
          %s447 = sadd.s32 %s446, 5
          %s448 = sld [smem:[#allocation3 + %s447]]
          %s450 = ssub.s32 16, 16
          %451 = vsyncadd %s443, %s450
          %s452 = smul.addr %s448, 16
          %s453 = scalar_lea.hbm %s7, %s452
          %s455 = sshll.u32 %s445, 4
          %s456 = int_to_ptr.vmem [resolvable:$true] %s455
          %458 = dma.hbm_to_vmem [thread:$0]  %s453, 16, %s456, %s443
        $region40: #{embedding_dropout.1} parent=15 // pred_fallthru
          _
        // Predicated region
        $region41: #{embedding_dropout.1} parent=15 // pred_check
          %p459 = pneg %p257
        $region42: #{embedding_dropout.1} parent=15 // pred_check_branch
          %461 = sbr.rel (%p459) target = $region44
        $region43: #{embedding_dropout.1} parent=15 // pred_region
          %s462 = sand.u32 %s41, 1
          %s463 = scalar_lea.sflag [#allocation15], %s462
          %s464 = sand.u32 %s247, 1
          %s465 = scalar_lea.vmem [#allocation16], %s464
          %s466 = smul.u32 %s41, 8
          %s467 = sadd.s32 %s466, 6
          %s468 = sld [smem:[#allocation3 + %s467]]
          %s470 = ssub.s32 16, 16
          %471 = vsyncadd %s463, %s470
          %s472 = smul.addr %s468, 16
          %s473 = scalar_lea.hbm %s8, %s472
          %s475 = sshll.u32 %s465, 4
          %s476 = int_to_ptr.vmem [resolvable:$true] %s475
          %478 = dma.hbm_to_vmem [thread:$0]  %s473, 16, %s476, %s463
        $region44: #{embedding_dropout.1} parent=15 // pred_fallthru
          _
        // Predicated region
        $region45: #{embedding_dropout.1} parent=15 // pred_check
          %p479 = pneg %p289
        $region46: #{embedding_dropout.1} parent=15 // pred_check_branch
          %481 = sbr.rel (%p479) target = $region48
        $region47: #{embedding_dropout.1} parent=15 // pred_region
          %s482 = sand.u32 %s279, 1
          %s483 = scalar_lea.sflag [#allocation18], %s482
          %s484 = sand.u32 %s279, 1
          %s485 = scalar_lea.vmem [#allocation17], %s484
          %s486 = smul.u32 %s41, 8
          %s487 = sadd.s32 %s486, 7
          %s488 = sld [smem:[#allocation3 + %s487]]
          %s490 = ssub.s32 16, 16
          %491 = vsyncadd %s483, %s490
          %s492 = smul.addr %s488, 16
          %s493 = scalar_lea.hbm %s9, %s492
          %s495 = sshll.u32 %s485, 4
          %s496 = int_to_ptr.vmem [resolvable:$true] %s495
          %498 = dma.hbm_to_vmem [thread:$0]  %s493, 16, %s496, %s483
        $region48: #{embedding_dropout.1} parent=15 // pred_fallthru
          _
      $region16: #{embedding_dropout.1} parent=5 // pred_fallthru
        _
      %p499 = scmp.le.s32.totalorder 1, %s41
      %p500 = scmp.lt.s32.totalorder %s41, 3
      %p501 = pnand %p499, %p500
      %p502 = pneg %p501
      // Predicated region
      $region49: #{embedding_dropout.1} parent=5 // pred_check
        _
      $region50: #{embedding_dropout.1} parent=5 // pred_check_branch
        %504 = sbr.rel (%p501) target = $region52
      $region51: #{embedding_dropout.1} parent=5 // pred_region
        %s505 = ssub.s32 %s41, 1
        %s506 = sand.u32 %s58, 1
        %s507 = scalar_lea.sflag [#allocation6], %s506
        %s508 = sand.u32 %s58, 1
        %s509 = scalar_lea.vmem [#allocation5], %s508
        // Predicated region
        $region53: #{embedding_dropout.1} parent=51 // pred_check
          %p510 = pneg %p71
        $region54: #{embedding_dropout.1} parent=51 // pred_check_branch
          %512 = sbr.rel (%p510) target = $region56
        $region55: #{embedding_dropout.1} parent=51 // pred_region
          %513 = dma.done %s507, 16
        $region56: #{embedding_dropout.1} parent=51 // pred_fallthru
          _
        %s514 = sand.u32 %s46, 1
        %s515 = scalar_lea.sflag [#allocation9], %s514
        %s516 = sand.u32 %s90, 1
        %s517 = scalar_lea.vmem [#allocation8], %s516
        // Predicated region
        $region57: #{embedding_dropout.1} parent=51 // pred_check
          %p518 = pneg %p103
        $region58: #{embedding_dropout.1} parent=51 // pred_check_branch
          %520 = sbr.rel (%p518) target = $region60
        $region59: #{embedding_dropout.1} parent=51 // pred_region
          %521 = dma.done %s515, 16
        $region60: #{embedding_dropout.1} parent=51 // pred_fallthru
          _
        %s522 = sand.u32 %s46, 1
        %s523 = scalar_lea.sflag [#allocation9], %s522
        %s524 = sand.u32 %s122, 1
        %s525 = scalar_lea.vmem [#allocation10], %s524
        // Predicated region
        $region61: #{embedding_dropout.1} parent=51 // pred_check
          %p526 = pneg %p135
        $region62: #{embedding_dropout.1} parent=51 // pred_check_branch
          %528 = sbr.rel (%p526) target = $region64
        $region63: #{embedding_dropout.1} parent=51 // pred_region
          %529 = dma.done %s523, 16
        $region64: #{embedding_dropout.1} parent=51 // pred_fallthru
          _
        %s530 = sand.u32 %s46, 1
        %s531 = scalar_lea.sflag [#allocation12], %s530
        %s532 = sand.u32 %s154, 1
        %s533 = scalar_lea.vmem [#allocation11], %s532
        // Predicated region
        $region65: #{embedding_dropout.1} parent=51 // pred_check
          %p534 = pneg %p167
        $region66: #{embedding_dropout.1} parent=51 // pred_check_branch
          %536 = sbr.rel (%p534) target = $region68
        $region67: #{embedding_dropout.1} parent=51 // pred_region
          %537 = dma.done %s531, 16
        $region68: #{embedding_dropout.1} parent=51 // pred_fallthru
          _
        %s538 = sand.u32 %s46, 1
        %s539 = scalar_lea.sflag [#allocation12], %s538
        %s540 = sand.u32 %s186, 1
        %s541 = scalar_lea.vmem [#allocation13], %s540
        // Predicated region
        $region69: #{embedding_dropout.1} parent=51 // pred_check
          %p542 = pneg %p199
        $region70: #{embedding_dropout.1} parent=51 // pred_check_branch
          %544 = sbr.rel (%p542) target = $region72
        $region71: #{embedding_dropout.1} parent=51 // pred_region
          %545 = dma.done %s539, 16
        $region72: #{embedding_dropout.1} parent=51 // pred_fallthru
          _
        %s546 = sand.u32 %s46, 1
        %s547 = scalar_lea.sflag [#allocation15], %s546
        %s548 = sand.u32 %s218, 1
        %s549 = scalar_lea.vmem [#allocation14], %s548
        // Predicated region
        $region73: #{embedding_dropout.1} parent=51 // pred_check
          %p550 = pneg %p231
        $region74: #{embedding_dropout.1} parent=51 // pred_check_branch
          %552 = sbr.rel (%p550) target = $region76
        $region75: #{embedding_dropout.1} parent=51 // pred_region
          %553 = dma.done %s547, 16
        $region76: #{embedding_dropout.1} parent=51 // pred_fallthru
          _
        %s554 = sand.u32 %s46, 1
        %s555 = scalar_lea.sflag [#allocation15], %s554
        %s556 = sand.u32 %s250, 1
        %s557 = scalar_lea.vmem [#allocation16], %s556
        // Predicated region
        $region77: #{embedding_dropout.1} parent=51 // pred_check
          %p558 = pneg %p263
        $region78: #{embedding_dropout.1} parent=51 // pred_check_branch
          %560 = sbr.rel (%p558) target = $region80
        $region79: #{embedding_dropout.1} parent=51 // pred_region
          %561 = dma.done %s555, 16
        $region80: #{embedding_dropout.1} parent=51 // pred_fallthru
          _
        %s562 = sand.u32 %s282, 1
        %s563 = scalar_lea.sflag [#allocation18], %s562
        %s564 = sand.u32 %s282, 1
        %s565 = scalar_lea.vmem [#allocation17], %s564
        // Predicated region
        $region81: #{embedding_dropout.1} parent=51 // pred_check
          %p566 = pneg %p295
        $region82: #{embedding_dropout.1} parent=51 // pred_check_branch
          %568 = sbr.rel (%p566) target = $region84
        $region83: #{embedding_dropout.1} parent=51 // pred_region
          %569 = dma.done %s563, 16
        $region84: #{embedding_dropout.1} parent=51 // pred_fallthru
          _
        %s570 = sand.u32 %s58, 1
        %s571 = scalar_lea.sflag [#allocation6], %s570
        %s572 = sand.u32 %s58, 1
        %s573 = scalar_lea.vmem [#allocation5], %s572
        %p574 = pneg %p71
        %p575 = pneg %p68
        %s576 = sand.u32 %s46, 1
        %s577 = scalar_lea.sflag [#allocation9], %s576
        %s578 = sand.u32 %s90, 1
        %s579 = scalar_lea.vmem [#allocation8], %s578
        %p580 = pneg %p103
        %p581 = pneg %p100
        %s582 = sand.u32 %s46, 1
        %s583 = scalar_lea.sflag [#allocation9], %s582
        %s584 = sand.u32 %s122, 1
        %s585 = scalar_lea.vmem [#allocation10], %s584
        %p586 = pneg %p135
        %p587 = pneg %p132
        %s588 = sand.u32 %s46, 1
        %s589 = scalar_lea.sflag [#allocation12], %s588
        %s590 = sand.u32 %s154, 1
        %s591 = scalar_lea.vmem [#allocation11], %s590
        %p592 = pneg %p167
        %p593 = pneg %p164
        %s594 = sand.u32 %s46, 1
        %s595 = scalar_lea.sflag [#allocation12], %s594
        %s596 = sand.u32 %s186, 1
        %s597 = scalar_lea.vmem [#allocation13], %s596
        %p598 = pneg %p199
        %p599 = pneg %p196
        %s600 = sand.u32 %s46, 1
        %s601 = scalar_lea.sflag [#allocation15], %s600
        %s602 = sand.u32 %s218, 1
        %s603 = scalar_lea.vmem [#allocation14], %s602
        %p604 = pneg %p231
        %p605 = pneg %p228
        %s606 = sand.u32 %s46, 1
        %s607 = scalar_lea.sflag [#allocation15], %s606
        %s608 = sand.u32 %s250, 1
        %s609 = scalar_lea.vmem [#allocation16], %s608
        %p610 = pneg %p263
        %p611 = pneg %p260
        %s612 = sand.u32 %s282, 1
        %s613 = scalar_lea.sflag [#allocation18], %s612
        %s614 = sand.u32 %s282, 1
        %s615 = scalar_lea.vmem [#allocation17], %s614
        %p616 = pneg %p295
        %p617 = pneg %p292
        %p618 = pneg %p321
        %p619 = pneg %p318
        %s620 = sand.u32 %s308, 1
        %s621 = scalar_lea.sflag [#allocation7], %s620
        %s622 = sand.u32 %s308, 1
        %s623 = smul.addr %s622, 8
        %s624 = scalar_lea.vmem [#allocation19], %s623
        %s625 = smul.u32 %s46, 8
        %s626 = sld [smem:[#allocation3 + %s625]]
        %s627 = smul.u32 %s46, 8
        %s628 = sadd.s32 %s627, 1
        %s629 = sld [smem:[#allocation3 + %s628]]
        %s630 = smul.u32 %s46, 8
        %s631 = sadd.s32 %s630, 2
        %s632 = sld [smem:[#allocation3 + %s631]]
        %s633 = smul.u32 %s46, 8
        %s634 = sadd.s32 %s633, 3
        %s635 = sld [smem:[#allocation3 + %s634]]
        %s636 = smul.u32 %s46, 8
        %s637 = sadd.s32 %s636, 4
        %s638 = sld [smem:[#allocation3 + %s637]]
        %s639 = smul.u32 %s46, 8
        %s640 = sadd.s32 %s639, 5
        %s641 = sld [smem:[#allocation3 + %s640]]
        %s642 = smul.u32 %s46, 8
        %s643 = sadd.s32 %s642, 6
        %s644 = sld [smem:[#allocation3 + %s643]]
        %s645 = smul.u32 %s46, 8
        %s646 = sadd.s32 %s645, 7
        %s647 = sld [smem:[#allocation3 + %s646]]
        %s648 = smul.u32 %s46, 8
        %s649 = sld [smem:[#allocation4]]
        %v650 = vld [vmem:[%s509] sm:$0x1]
        %s651 = sld [smem:[#allocation3 + %s648]]
        %v652 = vlaneseq
        %v653 = vand.u32 %v652, 127
        %s654 = smul.u32 %s649, 2654435761
        %s655 = smul.u32 %s651, 2246822519
        %s656 = sxor.u32 %s654, %s655
        %v657 = vmul.u32 %v653, 3266489917
        %v658 = vstv %s656
        %v659 = vxor.u32 %v658, %v657
        %v660 = vshrl.u32 %v659, 16
        %v661 = vxor.u32 %v659, %v660
        %v662 = vmul.u32 %v661, 2146121005
        %v663 = vshrl.u32 %v662, 15
        %v664 = vxor.u32 %v662, %v663
        %v665 = vmul.u32 %v664, 2221713035
        %v666 = vshrl.u32 %v665, 16
        %v667 = vxor.u32 %v665, %v666
        %v668 = vshrl.u32 %v667, 8
        %vm669 = vcmp.ge.s32.totalorder %v668, 8388608
        %v670 = vmul.f32 %v650, 2.0
        %v671 = vsel %vm669, %v670, 0.0
        %v672 = vld [vmem:[%s517] sm:$0x1]
        %s673 = sadd.s32 %s648, 1
        %s674 = sld [smem:[#allocation3 + %s673]]
        %s675 = smul.u32 %s674, 2246822519
        %s676 = sxor.u32 %s654, %s675
        %v677 = vstv %s676
        %v678 = vxor.u32 %v677, %v657
        %v679 = vshrl.u32 %v678, 16
        %v680 = vxor.u32 %v678, %v679
        %v681 = vmul.u32 %v680, 2146121005
        %v682 = vshrl.u32 %v681, 15
        %v683 = vxor.u32 %v681, %v682
        %v684 = vmul.u32 %v683, 2221713035
        %v685 = vshrl.u32 %v684, 16
        %v686 = vxor.u32 %v684, %v685
        %v687 = vshrl.u32 %v686, 8
        %vm688 = vcmp.ge.s32.totalorder %v687, 8388608
        %v689 = vmul.f32 %v672, 2.0
        %v690 = vsel %vm688, %v689, 0.0
        %v691 = vld [vmem:[%s525] sm:$0x1]
        %s692 = sadd.s32 %s648, 2
        %s693 = sld [smem:[#allocation3 + %s692]]
        %s694 = smul.u32 %s693, 2246822519
        %s695 = sxor.u32 %s654, %s694
        %v696 = vstv %s695
        %v697 = vxor.u32 %v696, %v657
        %v698 = vshrl.u32 %v697, 16
        %v699 = vxor.u32 %v697, %v698
        %v700 = vmul.u32 %v699, 2146121005
        %v701 = vshrl.u32 %v700, 15
        %v702 = vxor.u32 %v700, %v701
        %v703 = vmul.u32 %v702, 2221713035
        %v704 = vshrl.u32 %v703, 16
        %v705 = vxor.u32 %v703, %v704
        %v706 = vshrl.u32 %v705, 8
        %vm707 = vcmp.ge.s32.totalorder %v706, 8388608
        %v708 = vmul.f32 %v691, 2.0
        %v709 = vsel %vm707, %v708, 0.0
        %v710 = vld [vmem:[%s533] sm:$0x1]
        %s711 = sadd.s32 %s648, 3
        %s712 = sld [smem:[#allocation3 + %s711]]
        %s713 = smul.u32 %s712, 2246822519
        %s714 = sxor.u32 %s654, %s713
        %v715 = vstv %s714
        %v716 = vxor.u32 %v715, %v657
        %v717 = vshrl.u32 %v716, 16
        %v718 = vxor.u32 %v716, %v717
        %v719 = vmul.u32 %v718, 2146121005
        %v720 = vshrl.u32 %v719, 15
        %v721 = vxor.u32 %v719, %v720
        %v722 = vmul.u32 %v721, 2221713035
        %v723 = vshrl.u32 %v722, 16
        %v724 = vxor.u32 %v722, %v723
        %v725 = vshrl.u32 %v724, 8
        %vm726 = vcmp.ge.s32.totalorder %v725, 8388608
        %v727 = vmul.f32 %v710, 2.0
        %v728 = vsel %vm726, %v727, 0.0
        %v729 = vld [vmem:[%s541] sm:$0x1]
        %s730 = sadd.s32 %s648, 4
        %s731 = sld [smem:[#allocation3 + %s730]]
        %s732 = smul.u32 %s731, 2246822519
        %s733 = sxor.u32 %s654, %s732
        %v734 = vstv %s733
        %v735 = vxor.u32 %v734, %v657
        %v736 = vshrl.u32 %v735, 16
        %v737 = vxor.u32 %v735, %v736
        %v738 = vmul.u32 %v737, 2146121005
        %v739 = vshrl.u32 %v738, 15
        %v740 = vxor.u32 %v738, %v739
        %v741 = vmul.u32 %v740, 2221713035
        %v742 = vshrl.u32 %v741, 16
        %v743 = vxor.u32 %v741, %v742
        %v744 = vshrl.u32 %v743, 8
        %vm745 = vcmp.ge.s32.totalorder %v744, 8388608
        %v746 = vmul.f32 %v729, 2.0
        %v747 = vsel %vm745, %v746, 0.0
        %v748 = vld [vmem:[%s549] sm:$0x1]
        %s749 = sadd.s32 %s648, 5
        %s750 = sld [smem:[#allocation3 + %s749]]
        %s751 = smul.u32 %s750, 2246822519
        %s752 = sxor.u32 %s654, %s751
        %v753 = vstv %s752
        %v754 = vxor.u32 %v753, %v657
        %v755 = vshrl.u32 %v754, 16
        %v756 = vxor.u32 %v754, %v755
        %v757 = vmul.u32 %v756, 2146121005
        %v758 = vshrl.u32 %v757, 15
        %v759 = vxor.u32 %v757, %v758
        %v760 = vmul.u32 %v759, 2221713035
        %v761 = vshrl.u32 %v760, 16
        %v762 = vxor.u32 %v760, %v761
        %v763 = vshrl.u32 %v762, 8
        %vm764 = vcmp.ge.s32.totalorder %v763, 8388608
        %v765 = vmul.f32 %v748, 2.0
        %v766 = vsel %vm764, %v765, 0.0
        %v767 = vld [vmem:[%s557] sm:$0x1]
        %s768 = sadd.s32 %s648, 6
        %s769 = sld [smem:[#allocation3 + %s768]]
        %s770 = smul.u32 %s769, 2246822519
        %s771 = sxor.u32 %s654, %s770
        %v772 = vstv %s771
        %v773 = vxor.u32 %v772, %v657
        %v774 = vshrl.u32 %v773, 16
        %v775 = vxor.u32 %v773, %v774
        %v776 = vmul.u32 %v775, 2146121005
        %v777 = vshrl.u32 %v776, 15
        %v778 = vxor.u32 %v776, %v777
        %v779 = vmul.u32 %v778, 2221713035
        %v780 = vshrl.u32 %v779, 16
        %v781 = vxor.u32 %v779, %v780
        %v782 = vshrl.u32 %v781, 8
        %vm783 = vcmp.ge.s32.totalorder %v782, 8388608
        %v784 = vmul.f32 %v767, 2.0
        %v785 = vsel %vm783, %v784, 0.0
        %v786 = vld [vmem:[%s565] sm:$0x1]
        %s787 = sadd.s32 %s648, 7
        %s788 = sld [smem:[#allocation3 + %s787]]
        %s789 = smul.u32 %s788, 2246822519
        %s790 = sxor.u32 %s654, %s789
        %v791 = vstv %s790
        %v792 = vxor.u32 %v791, %v657
        %v793 = vshrl.u32 %v792, 16
        %v794 = vxor.u32 %v792, %v793
        %v795 = vmul.u32 %v794, 2146121005
        %v796 = vshrl.u32 %v795, 15
        %v797 = vxor.u32 %v795, %v796
        %v798 = vmul.u32 %v797, 2221713035
        %v799 = vshrl.u32 %v798, 16
        %v800 = vxor.u32 %v798, %v799
        %v801 = vshrl.u32 %v800, 8
        %vm802 = vcmp.ge.s32.totalorder %v801, 8388608
        %v803 = vmul.f32 %v786, 2.0
        %v804 = vsel %vm802, %v803, 0.0
        %v806 = vrot.slane %v690, 7
        %v809 = vrot.slane %v709, 6
        %v812 = vrot.slane %v728, 5
        %v815 = vrot.slane %v747, 4
        %v818 = vrot.slane %v766, 3
        %v821 = vrot.slane %v785, 2
        %v824 = vrot.slane %v804, 1
        %vm826 = vcmask 1040384
        %v827 = vsel %vm826, %v671, %v806
        %vm828 = vcmask 1041408
        %v829 = vsel %vm828, %v827, %v809
        %vm830 = vcmask 1042432
        %v831 = vsel %vm830, %v829, %v812
        %vm832 = vcmask 1043456
        %v833 = vsel %vm832, %v831, %v815
        %vm834 = vcmask 1044480
        %v835 = vsel %vm834, %v833, %v818
        %vm836 = vcmask 1045504
        %v837 = vsel %vm836, %v835, %v821
        %vm838 = vcmask 1046528
        %v839 = vsel %vm838, %v837, %v824
        %840 = vst [vmem:[%s624] sm:$0xff] %v839
        %s841 = sand.u32 %s308, 1
        %s842 = scalar_lea.sflag [#allocation7], %s841
        %s843 = sand.u32 %s308, 1
        %s844 = smul.addr %s843, 8
        %s845 = scalar_lea.vmem [#allocation19], %s844
        // Predicated region
        $region85: #{embedding_dropout.1} parent=51 // pred_check
          %p846 = pneg %p318
        $region86: #{embedding_dropout.1} parent=51 // pred_check_branch
          %848 = sbr.rel (%p846) target = $region88
        $region87: #{embedding_dropout.1} parent=51 // pred_region
          %s850 = ssub.s32 128, 128
          %851 = vsyncadd %s842, %s850
          %s852 = smul.addr %s46, 128
          %s853 = scalar_lea.hbm %s10, %s852
          %s855 = sshll.u32 %s845, 4
          %s856 = int_to_ptr.vmem [resolvable:$true] %s855
          %858 = dma.vmem_to_hbm [thread:$0]  %s856, 128, %s853, %s842
        $region88: #{embedding_dropout.1} parent=51 // pred_fallthru
          _
      $region52: #{embedding_dropout.1} parent=5 // pred_fallthru
        _
      %p859 = scmp.le.s32.totalorder 2, %s41
      // Predicated region
      $region89: #{embedding_dropout.1} parent=5 // pred_check
        %p860 = pneg %p859
      $region90: #{embedding_dropout.1} parent=5 // pred_check_branch
        %862 = sbr.rel (%p860) target = $region92
      $region91: #{embedding_dropout.1} parent=5 // pred_region
        %s863 = ssub.s32 %s41, 2
        // Predicated region
        $region93: #{embedding_dropout.1} parent=91 // pred_check
          %p864 = pneg %p324
        $region94: #{embedding_dropout.1} parent=91 // pred_check_branch
          %866 = sbr.rel (%p864) target = $region96
        $region95: #{embedding_dropout.1} parent=91 // pred_region
          %s867 = sand.u32 %s309, 1
          %s868 = scalar_lea.sflag [#allocation7], %s867
          %s869 = sand.u32 %s309, 1
          %s870 = smul.addr %s869, 8
          %s871 = scalar_lea.vmem [#allocation19], %s870
          %872 = dma.done %s868, 128
        $region96: #{embedding_dropout.1} parent=91 // pred_fallthru
          _
      $region92: #{embedding_dropout.1} parent=5 // pred_fallthru
        _
    $region6: #{embedding_dropout.1} parent=1 // loop_footer
      %s45 = sadd.s32 1, %s41
    $region7: #{embedding_dropout.1} parent=1 // loop_footer_branch
      %40 = sbr.rel target = $region3
    $region8: #{embedding_dropout.1} parent=1 // loop_exit
      _
    %873 = vsyncpa [#allocation6], 1
    %s874 = scalar_lea.sflag [#allocation6], 1
    %875 = vsyncpa %s874, 1
    %876 = vsyncpa [#allocation9], 1
    %s877 = scalar_lea.sflag [#allocation9], 1
    %878 = vsyncpa %s877, 1
    %879 = vsyncpa [#allocation12], 1
    %s880 = scalar_lea.sflag [#allocation12], 1
    %881 = vsyncpa %s880, 1
    %882 = vsyncpa [#allocation15], 1
    %s883 = scalar_lea.sflag [#allocation15], 1
    %884 = vsyncpa %s883, 1
    %885 = vsyncpa [#allocation18], 1
    %s886 = scalar_lea.sflag [#allocation18], 1
    %887 = vsyncpa %s886, 1
    %888 = vsyncpa [#allocation7], 1
    %s889 = scalar_lea.sflag [#allocation7], 1
    %890 = vsyncpa %s889, 1

</llo_original>
